<compile_context>
chip_gen: v7x
topology: tpu7x:2x2x1
jax: 0.10.0
libtpu: 0.0.40
codegen_flags: <defaults>
</compile_context>

<pallas_src>
import math

import jax
import jax.numpy as jnp
from jax import lax
from jax.experimental import pallas as pl
from jax.experimental.pallas import tpu as pltpu


def _layer_norm(x, g, b, eps=1e-5):
    mu = jnp.mean(x, axis=-1, keepdims=True)
    xc = x - mu
    var = jnp.mean(xc * xc, axis=-1, keepdims=True)
    return xc * lax.rsqrt(var + eps) * g + b


def _make_kernel(n_layer, n_head, n_embd, n_dims, n_out_pad, seq_len, batch_blk):
    E = n_embd
    T = seq_len
    Bb = batch_blk
    H = n_head
    hd = E // H
    G = Bb * H                      # head-batched group count
    M = Bb * T                      # folded (batch, token) rows -> matmul M axis
    scale = 1.0 / math.sqrt(hd)

    def kernel(zs_ref, causal_ref, w_in_ref, b_in_ref, wpe_ref,
               ln1g_ref, ln1b_ref, wqkv_ref, bqkv_ref, wap_ref, bap_ref,
               ln2g_ref, ln2b_ref, wfc_ref, bfc_ref, wmp_ref, bmp_ref,
               lnfg_ref, lnfb_ref, wout_ref, bout_ref,
               out_ref, h_ref):
        # ---- embed: _read_in + learned positional embeddings ----
        zs = zs_ref[...].reshape(M, n_dims).astype(jnp.bfloat16)
        h0 = jnp.dot(zs, w_in_ref[...],
                     preferred_element_type=jnp.float32) + b_in_ref[...]
        h_ref[...] = (h0.reshape(Bb, T, E) + wpe_ref[...]).reshape(M, E)

        causal_bias = causal_ref[...]                       # (T, T) f32, resident

        # ---- transformer layers: resident weights, in-kernel layer loop ----
        @pl.loop(0, n_layer)
        def _layer(l):
            h = h_ref[...]                                  # (M, E) f32

            # -- causal self-attention (pre-LN) --
            x = _layer_norm(h, ln1g_ref[l], ln1b_ref[l])
            qkv = jnp.dot(x.astype(jnp.bfloat16), wqkv_ref[l],
                          preferred_element_type=jnp.float32) + bqkv_ref[l]   # (M, 3E)

            # relayout to head-batched form using only minor transposes and
            # leading/second-minor reshapes (no per-head lane slicing, no concat)
            qkv_t = jnp.swapaxes(qkv.reshape(Bb, T, 3 * E), -1, -2)           # (Bb, 3E, T)
            qkv_t = qkv_t.reshape(Bb, 3 * H, hd, T)                           # (Bb, 3H, hd, T)
            q = qkv_t[:, 0:H].reshape(G, hd, T)
            k = qkv_t[:, H:2 * H].reshape(G, hd, T)
            v = qkv_t[:, 2 * H:3 * H].reshape(G, hd, T)
            q = (jnp.swapaxes(q, -1, -2) * scale).astype(jnp.bfloat16)        # (G, T, hd)
            k = k.astype(jnp.bfloat16)                                        # (G, hd, T)
            v = jnp.swapaxes(v, -1, -2).astype(jnp.bfloat16)                  # (G, T, hd)

            s = jnp.einsum('gtd,gds->gts', q, k,
                           preferred_element_type=jnp.float32)                # (G, T, T)
            s = s + causal_bias
            m = jnp.max(s, axis=-1, keepdims=True)
            p = jnp.exp(s - m)
            inv_l = pl.reciprocal(jnp.sum(p, axis=-1, keepdims=True),
                                  approx=True)                                # (G, T, 1)
            o = jnp.einsum('gts,gsd->gtd', p.astype(jnp.bfloat16), v,
                           preferred_element_type=jnp.float32)                # (G, T, hd)
            o = o * inv_l                                                     # normalize post-PV

            # back to (M, E), columns ordered (head, dim) as GPT-2's merge_heads
            o = jnp.swapaxes(o.reshape(Bb, H, T, hd), -1, -2).reshape(Bb, E, T)
            attn = jnp.swapaxes(o, -1, -2).reshape(M, E)

            proj = jnp.dot(attn.astype(jnp.bfloat16), wap_ref[l],
                           preferred_element_type=jnp.float32) + bap_ref[l]
            h = h + proj

            # -- MLP block (pre-LN) --
            x2 = _layer_norm(h, ln2g_ref[l], ln2b_ref[l])
            ff = jnp.dot(x2.astype(jnp.bfloat16), wfc_ref[l],
                         preferred_element_type=jnp.float32) + bfc_ref[l]
            ff = jax.nn.gelu(ff, approximate=True)           # GPT-2 "gelu_new"
            ff = jnp.dot(ff.astype(jnp.bfloat16), wmp_ref[l],
                         preferred_element_type=jnp.float32) + bmp_ref[l]
            h_ref[...] = h + ff

        # ---- ln_f + _read_out (lane-padded output, dense stores) ----
        # TODO(synk): could restrict the read_out matmul/store to even-token
        # rows (wrapper keeps only pred[:, ::2, :]) to halve last-layer work.
        hf = _layer_norm(h_ref[...], lnfg_ref[...], lnfb_ref[...])
        pred = jnp.dot(hf.astype(jnp.bfloat16), wout_ref[...],
                       preferred_element_type=jnp.float32) + bout_ref[...]
        out_ref[...] = pred.reshape(Bb, T, n_out_pad).astype(out_ref.dtype)

    return kernel


_PARAM_ORDER = ("w_in", "b_in", "wpe",
                "ln1_g", "ln1_b", "w_qkv", "b_qkv", "w_ap", "b_ap",
                "ln2_g", "ln2_b", "w_fc", "b_fc", "w_mp", "b_mp",
                "lnf_g", "lnf_b", "w_out", "b_out")


def _resident_spec(arr):
    nd = arr.ndim
    return pl.BlockSpec(tuple(arr.shape), lambda b, _nd=nd: (0,) * _nd)


def _vmem_capacity_bytes():
    try:
        return int(pltpu.get_tpu_info().vmem_capacity_bytes)
    except Exception:
        return 64 * 2**20           # conservative (v7x-sized) fallback


def backbone_pallas(zs, params, *, n_layer, n_head, n_embd, n_dims_out):
    B, T, n_dims = zs.shape
    E = n_embd
    n_out_pad = params["w_out"].shape[1]          # already lane-padded

    cap = _vmem_capacity_bytes()

    # --- batch-block sizing (generation aware) ---
    # 128 MiB parts (v5e/v6e): target M = Bb*T ~ 1024; 64 MiB parts (v7x): ~512.
    target_m = 1024 if cap >= 100 * 2**20 else 512
    Bb = max(1, min(B, target_m // max(1, T)))
    # keep (Bb*H, T, T) f32 attention score tensors modest
    Bb = min(Bb, max(1, (16 * 2**20) // max(1, n_head * T * T * 8)))
    # at least 2 batch blocks when B >= 2 so v7x's two TensorCores both get work
    if B >= 2:
        Bb = min(Bb, pl.cdiv(B, 2))
    B_pad = pl.cdiv(B, Bb) * Bb
    if B_pad != B:
        zs = jnp.concatenate(
            [zs, jnp.zeros((B_pad - B, T, n_dims), zs.dtype)], axis=0)
    num_b = B_pad // Bb
    M = Bb * T

    kernel = _make_kernel(n_layer, n_head, E, n_dims, n_out_pad, T, Bb)
    weights = [params[k] for k in _PARAM_ORDER]

    # precomputed additive causal bias, passed as a resident input
    causal = jnp.where(jnp.arange(T)[:, None] >= jnp.arange(T)[None, :],
                       0.0, -1e30).astype(jnp.float32)

    in_specs = [pl.BlockSpec((Bb, T, n_dims), lambda b: (b, 0, 0)),
                _resident_spec(causal)]
    in_specs += [_resident_spec(params[k]) for k in _PARAM_ORDER]

    # --- VMEM budget: resident (double-buffered) weights + activations,
    #     clamped to chip capacity minus ~12 MiB headroom ---
    # TODO(synk): a layer-streamed fallback would be needed for weight stacks
    # that do not fit VMEM (very large E*L); typical configs fit easily.
    wbytes = sum(int(w.size) * w.dtype.itemsize for w in weights) + causal.size * 4
    io_bytes = Bb * T * (n_dims + n_out_pad) * 4
    act_bytes = (M * 14 * E + Bb * n_head * T * T * 3) * 4
    need = 2 * (wbytes + io_bytes) + act_bytes + M * E * 4 + (4 << 20)
    vmem_limit = int(max(16 * 2**20,
                         min(cap - 12 * 2**20, max(32 * 2**20, need))))

    out = pl.pallas_call(
        kernel,
        out_shape=jax.ShapeDtypeStruct((B_pad, T, n_out_pad), jnp.float32),
        grid=(num_b,),
        in_specs=in_specs,
        out_specs=pl.BlockSpec((Bb, T, n_out_pad), lambda b: (b, 0, 0)),
        scratch_shapes=[pltpu.VMEM((M, E), jnp.float32)],
        compiler_params=pltpu.CompilerParams(
            dimension_semantics=("parallel",),
            vmem_limit_bytes=vmem_limit),
    )(zs, causal, *weights)
    return out[:B, :, :n_dims_out]


def inverse_problem_transformer_forward(xs, ys, params, *, n_dims_out,
                                        n_layer, n_head, n_embd):
    """Reproduces InverseProblemTransformerModel.forward (inds=None,
    output_hidden_states=False).  Dropout probabilities are 0 in the config,
    so omitting dropout is exact."""
    # swap xs and ys (the xs are predicted from the ys)
    xs_s, ys_s = ys, xs
    B, P, D = xs_s.shape
    ys_flat = ys_s.reshape(B, P, n_dims_out)
    if n_dims_out < D:
        ys_wide = jnp.concatenate(
            [ys_flat, jnp.zeros((B, P, D - n_dims_out), dtype=xs_s.dtype)], axis=2)
    else:
        assert n_dims_out == D
        ys_wide = ys_flat
    # interleave: (x_0, y_0, x_1, y_1, ...)
    zs = jnp.stack([xs_s, ys_wide], axis=2).reshape(B, 2 * P, D)

    pred = backbone_pallas(zs, params, n_layer=n_layer, n_head=n_head,
                           n_embd=n_embd, n_dims_out=n_dims_out)
    # prediction[:, ::2, :][:, inds, :] with default inds = arange(P)
    return pred[:, ::2, :]
    # TODO(synk): output_hidden_states=True path (returning per-layer hidden
    # states) is not implemented in the fused kernel.


def init_params(key, *, n_dims, n_positions, n_embd, n_layer, n_dims_out):
    T = 2 * n_positions
    E, L = n_embd, n_layer
    ks = jax.random.split(key, 13)
    s = 0.02
    nrm = lambda k, shape: s * jax.random.normal(k, shape, jnp.float32)
    return {
        "w_in":  nrm(ks[0], (n_dims, E)),
        "b_in":  nrm(ks[1], (E,)),
        "wpe":   nrm(ks[2], (T, E)),
        "ln1_g": jnp.ones((L, E), jnp.float32),
        "ln1_b": jnp.zeros((L, E), jnp.float32),
        "w_qkv": nrm(ks[3], (L, E, 3 * E)),
        "b_qkv": nrm(ks[4], (L, 3 * E)),
        "w_ap":  nrm(ks[5], (L, E, E)),
        "b_ap":  nrm(ks[6], (L, E)),
        "ln2_g": jnp.ones((L, E), jnp.float32),
        "ln2_b": jnp.zeros((L, E), jnp.float32),
        "w_fc":  nrm(ks[7], (L, E, 4 * E)),
        "b_fc":  nrm(ks[8], (L, 4 * E)),
        "w_mp":  nrm(ks[9], (L, 4 * E, E)),
        "b_mp":  nrm(ks[10], (L, E)),
        "lnf_g": jnp.ones((E,), jnp.float32),
        "lnf_b": jnp.zeros((E,), jnp.float32),
        "w_out": nrm(ks[11], (E, n_dims_out)),
        "b_out": nrm(ks[12], (n_dims_out,)),
    }


def prepare_params(params, *, n_dims_out):
    """Cast matmul weights to bf16, reshape per-layer vectors to (L,1,dim),
    and lane-pad the read_out head to a multiple of 128."""
    L = params["w_qkv"].shape[0]
    n_out_pad = max(128, ((n_dims_out + 127) // 128) * 128)

    bf16 = lambda x: x.astype(jnp.bfloat16)
    row = lambda x: x.reshape(1, -1).astype(jnp.float32)
    lrow = lambda x: x.reshape(L, 1, -1).astype(jnp.float32)

    w_out = jnp.pad(params["w_out"].astype(jnp.float32),
                    ((0, 0), (0, n_out_pad - n_dims_out))).astype(jnp.bfloat16)
    b_out = jnp.pad(params["b_out"].reshape(1, -1).astype(jnp.float32),
                    ((0, 0), (0, n_out_pad - n_dims_out)))

    return {
        "w_in": bf16(params["w_in"]), "b_in": row(params["b_in"]),
        "wpe": params["wpe"].astype(jnp.float32),
        "ln1_g": lrow(params["ln1_g"]), "ln1_b": lrow(params["ln1_b"]),
        "w_qkv": bf16(params["w_qkv"]), "b_qkv": lrow(params["b_qkv"]),
        "w_ap": bf16(params["w_ap"]), "b_ap": lrow(params["b_ap"]),
        "ln2_g": lrow(params["ln2_g"]), "ln2_b": lrow(params["ln2_b"]),
        "w_fc": bf16(params["w_fc"]), "b_fc": lrow(params["b_fc"]),
        "w_mp": bf16(params["w_mp"]), "b_mp": lrow(params["b_mp"]),
        "lnf_g": row(params["lnf_g"]), "lnf_b": row(params["lnf_b"]),
        "w_out": w_out, "b_out": b_out,
    }


if __name__ == "__main__":
    # small config consistent with the module: points=8, n_dims=8,
    # n_embd=32, n_layer=2, n_head=4, n_dims_out=1
    B, P = 2, 8
    n_dims, n_dims_out = 8, 1
    n_embd, n_layer, n_head = 32, 2, 4

    key = jax.random.PRNGKey(0)
    kx, ky, kp = jax.random.split(key, 3)
    xs = jax.random.normal(kx, (B, P, n_dims_out), jnp.float32)  # predicted quantity
    ys = jax.random.normal(ky, (B, P, n_dims), jnp.float32)      # observations

    raw = init_params(kp, n_dims=n_dims, n_positions=P, n_embd=n_embd,
                      n_layer=n_layer, n_dims_out=n_dims_out)
    params = prepare_params(raw, n_dims_out=n_dims_out)

    out = inverse_problem_transformer_forward(
        xs, ys, params, n_dims_out=n_dims_out,
        n_layer=n_layer, n_head=n_head, n_embd=n_embd)
    out = jax.block_until_ready(out)

    assert out.shape == (B, P, n_dims_out), out.shape
    assert bool(jnp.all(jnp.isfinite(out)))
    print("KERNEL_OK")
</pallas_src>

<mosaic_0001>
module attributes {stable_mosaic.version = 11 : i64} {
  func.func @kernel(%arg0: i32, %arg1: memref<1x16x8xf32, #tpu.memory_space<vmem>>, %arg2: memref<16x16xf32, #tpu.memory_space<vmem>>, %arg3: memref<8x32xbf16, #tpu.memory_space<vmem>>, %arg4: memref<1x32xf32, #tpu.memory_space<vmem>>, %arg5: memref<16x32xf32, #tpu.memory_space<vmem>>, %arg6: memref<2x1x32xf32, #tpu.memory_space<vmem>>, %arg7: memref<2x1x32xf32, #tpu.memory_space<vmem>>, %arg8: memref<2x32x96xbf16, #tpu.memory_space<vmem>>, %arg9: memref<2x1x96xf32, #tpu.memory_space<vmem>>, %arg10: memref<2x32x32xbf16, #tpu.memory_space<vmem>>, %arg11: memref<2x1x32xf32, #tpu.memory_space<vmem>>, %arg12: memref<2x1x32xf32, #tpu.memory_space<vmem>>, %arg13: memref<2x1x32xf32, #tpu.memory_space<vmem>>, %arg14: memref<2x32x128xbf16, #tpu.memory_space<vmem>>, %arg15: memref<2x1x128xf32, #tpu.memory_space<vmem>>, %arg16: memref<2x128x32xbf16, #tpu.memory_space<vmem>>, %arg17: memref<2x1x32xf32, #tpu.memory_space<vmem>>, %arg18: memref<1x32xf32, #tpu.memory_space<vmem>>, %arg19: memref<1x32xf32, #tpu.memory_space<vmem>>, %arg20: memref<32x128xbf16, #tpu.memory_space<vmem>>, %arg21: memref<1x128xf32, #tpu.memory_space<vmem>>, %arg22: memref<1x16x128xf32, #tpu.memory_space<vmem>>, %arg23: memref<16x32xf32, #tpu.memory_space<vmem>>) attributes {dimension_semantics = [#tpu.dimension_semantics<parallel>], iteration_bounds = array<i64: 2>, scalar_prefetch = 0 : i64, scratch_operands = 1 : i64, tpu.core_type = #tpu.core_type<tc>, window_params = [{transform_indices = @transform_0, window_bounds = array<i64: 1, 16, 8>}, {pipeline_mode = #tpu.pipeline_mode<synchronous>, transform_indices = @transform_1, window_bounds = array<i64: 16, 16>}, {pipeline_mode = #tpu.pipeline_mode<synchronous>, transform_indices = @transform_2, window_bounds = array<i64: 8, 32>}, {pipeline_mode = #tpu.pipeline_mode<synchronous>, transform_indices = @transform_3, window_bounds = array<i64: 1, 32>}, {pipeline_mode = #tpu.pipeline_mode<synchronous>, transform_indices = @transform_4, window_bounds = array<i64: 16, 32>}, {pipeline_mode = #tpu.pipeline_mode<synchronous>, transform_indices = @transform_5, window_bounds = array<i64: 2, 1, 32>}, {pipeline_mode = #tpu.pipeline_mode<synchronous>, transform_indices = @transform_6, window_bounds = array<i64: 2, 1, 32>}, {pipeline_mode = #tpu.pipeline_mode<synchronous>, transform_indices = @transform_7, window_bounds = array<i64: 2, 32, 96>}, {pipeline_mode = #tpu.pipeline_mode<synchronous>, transform_indices = @transform_8, window_bounds = array<i64: 2, 1, 96>}, {pipeline_mode = #tpu.pipeline_mode<synchronous>, transform_indices = @transform_9, window_bounds = array<i64: 2, 32, 32>}, {pipeline_mode = #tpu.pipeline_mode<synchronous>, transform_indices = @transform_10, window_bounds = array<i64: 2, 1, 32>}, {pipeline_mode = #tpu.pipeline_mode<synchronous>, transform_indices = @transform_11, window_bounds = array<i64: 2, 1, 32>}, {pipeline_mode = #tpu.pipeline_mode<synchronous>, transform_indices = @transform_12, window_bounds = array<i64: 2, 1, 32>}, {pipeline_mode = #tpu.pipeline_mode<synchronous>, transform_indices = @transform_13, window_bounds = array<i64: 2, 32, 128>}, {pipeline_mode = #tpu.pipeline_mode<synchronous>, transform_indices = @transform_14, window_bounds = array<i64: 2, 1, 128>}, {pipeline_mode = #tpu.pipeline_mode<synchronous>, transform_indices = @transform_15, window_bounds = array<i64: 2, 128, 32>}, {pipeline_mode = #tpu.pipeline_mode<synchronous>, transform_indices = @transform_16, window_bounds = array<i64: 2, 1, 32>}, {pipeline_mode = #tpu.pipeline_mode<synchronous>, transform_indices = @transform_17, window_bounds = array<i64: 1, 32>}, {pipeline_mode = #tpu.pipeline_mode<synchronous>, transform_indices = @transform_18, window_bounds = array<i64: 1, 32>}, {pipeline_mode = #tpu.pipeline_mode<synchronous>, transform_indices = @transform_19, window_bounds = array<i64: 32, 128>}, {pipeline_mode = #tpu.pipeline_mode<synchronous>, transform_indices = @transform_20, window_bounds = array<i64: 1, 128>}, {transform_indices = @transform_21, window_bounds = array<i64: 1, 16, 128>}]} {
    %c0 = arith.constant 0 : index
    %c0_0 = arith.constant 0 : index
    %c0_1 = arith.constant 0 : index
    %0 = vector.load %arg1[%c0, %c0_0, %c0_1] : memref<1x16x8xf32, #tpu.memory_space<vmem>>, vector<1x16x8xf32>
    %1 = vector.shape_cast %0 : vector<1x16x8xf32> to vector<16x8xf32>
    %2 = arith.truncf %1 : vector<16x8xf32> to vector<16x8xbf16>
    %c0_2 = arith.constant 0 : index
    %c0_3 = arith.constant 0 : index
    %3 = vector.load %arg3[%c0_2, %c0_3] : memref<8x32xbf16, #tpu.memory_space<vmem>>, vector<8x32xbf16>
    %cst = arith.constant dense<0.000000e+00> : vector<16x32xf32>
    %4 = tpu.matmul %2, %3, %cst {dimension_numbers = #tpu.dot_dimension_numbers<[1], [0], [0], [1], [0, 0, 1, 1], [], []>} : vector<16x8xbf16>, vector<8x32xbf16>, vector<16x32xf32> -> vector<16x32xf32>
    %c0_4 = arith.constant 0 : index
    %c0_5 = arith.constant 0 : index
    %5 = vector.load %arg4[%c0_4, %c0_5] : memref<1x32xf32, #tpu.memory_space<vmem>>, vector<1x32xf32>
    %6 = vector.broadcast %5 : vector<1x32xf32> to vector<16x32xf32>
    %7 = arith.addf %4, %6 : vector<16x32xf32>
    %8 = vector.shape_cast %7 : vector<16x32xf32> to vector<1x16x32xf32>
    %c0_6 = arith.constant 0 : index
    %c0_7 = arith.constant 0 : index
    %9 = vector.load %arg5[%c0_6, %c0_7] : memref<16x32xf32, #tpu.memory_space<vmem>>, vector<16x32xf32>
    %10 = vector.shape_cast %9 : vector<16x32xf32> to vector<1x16x32xf32>
    %11 = arith.addf %8, %10 : vector<1x16x32xf32>
    %12 = vector.shape_cast %11 : vector<1x16x32xf32> to vector<16x32xf32>
    %c0_8 = arith.constant 0 : index
    %c0_9 = arith.constant 0 : index
    %13 = vector.load %arg23[%c0_8, %c0_9] : memref<16x32xf32, #tpu.memory_space<vmem>>, vector<16x32xf32>
    tpu.vector_store %arg23[%c0_8, %c0_9], %12 {strides = array<i32>} : memref<16x32xf32, #tpu.memory_space<vmem>>, vector<16x32xf32>,
    %c0_10 = arith.constant 0 : index
    %c0_11 = arith.constant 0 : index
    %14 = vector.load %arg2[%c0_10, %c0_11] : memref<16x16xf32, #tpu.memory_space<vmem>>, vector<16x16xf32>
    %c0_i32 = arith.constant 0 : i32
    %c2_i32 = arith.constant 2 : i32
    %15 = arith.addi %c0_i32, %c2_i32 : i32
    %c1_i32 = arith.constant 1 : i32
    scf.for %arg24 = %c0_i32 to %15 step %c1_i32  : i32 {
      %c1_i32_32 = arith.constant 1 : i32
      %47 = arith.muli %arg24, %c1_i32_32 : i32
      %c0_i32_33 = arith.constant 0 : i32
      %48 = arith.addi %c0_i32_33, %47 : i32
      %c0_34 = arith.constant 0 : index
      %c0_35 = arith.constant 0 : index
      %49 = vector.load %arg23[%c0_34, %c0_35] : memref<16x32xf32, #tpu.memory_space<vmem>>, vector<16x32xf32>
      %50 = arith.index_cast %48 : i32 to index
      %c0_36 = arith.constant 0 : index
      %c0_37 = arith.constant 0 : index
      %51 = vector.load %arg6[%50, %c0_36, %c0_37] : memref<2x1x32xf32, #tpu.memory_space<vmem>>, vector<1x1x32xf32>
      %52 = vector.shape_cast %51 : vector<1x1x32xf32> to vector<1x32xf32>
      %53 = arith.index_cast %48 : i32 to index
      %c0_38 = arith.constant 0 : index
      %c0_39 = arith.constant 0 : index
      %54 = vector.load %arg7[%53, %c0_38, %c0_39] : memref<2x1x32xf32, #tpu.memory_space<vmem>>, vector<1x1x32xf32>
      %55 = vector.shape_cast %54 : vector<1x1x32xf32> to vector<1x32xf32>
      %cst_40 = arith.constant dense<0.000000e+00> : vector<16xf32>
      %56 = vector.multi_reduction <add>, %49, %cst_40 [1] : vector<16x32xf32> to vector<16xf32>
      %57 = vector.shape_cast %56 : vector<16xf32> to vector<16x1xf32>
      %cst_41 = arith.constant 3.200000e+01 : f32
      %58 = vector.broadcast %cst_41 : f32 to vector<16x1xf32>
      %59 = arith.divf %57, %58 : vector<16x1xf32>
      %60 = vector.broadcast %59 : vector<16x1xf32> to vector<16x32xf32>
      %61 = arith.subf %49, %60 : vector<16x32xf32>
      %62 = arith.mulf %61, %61 : vector<16x32xf32>
      %cst_42 = arith.constant dense<0.000000e+00> : vector<16xf32>
      %63 = vector.multi_reduction <add>, %62, %cst_42 [1] : vector<16x32xf32> to vector<16xf32>
      %64 = vector.shape_cast %63 : vector<16xf32> to vector<16x1xf32>
      %cst_43 = arith.constant 3.200000e+01 : f32
      %65 = vector.broadcast %cst_43 : f32 to vector<16x1xf32>
      %66 = arith.divf %64, %65 : vector<16x1xf32>
      %cst_44 = arith.constant 9.99999974E-6 : f32
      %67 = vector.broadcast %cst_44 : f32 to vector<16x1xf32>
      %68 = arith.addf %66, %67 : vector<16x1xf32>
      %69 = math.rsqrt %68 : vector<16x1xf32>
      %70 = vector.broadcast %69 : vector<16x1xf32> to vector<16x32xf32>
      %71 = arith.mulf %61, %70 : vector<16x32xf32>
      %72 = vector.broadcast %52 : vector<1x32xf32> to vector<16x32xf32>
      %73 = arith.mulf %71, %72 : vector<16x32xf32>
      %74 = vector.broadcast %55 : vector<1x32xf32> to vector<16x32xf32>
      %75 = arith.addf %73, %74 : vector<16x32xf32>
      %76 = arith.truncf %75 : vector<16x32xf32> to vector<16x32xbf16>
      %77 = arith.index_cast %48 : i32 to index
      %c0_45 = arith.constant 0 : index
      %c0_46 = arith.constant 0 : index
      %78 = vector.load %arg8[%77, %c0_45, %c0_46] : memref<2x32x96xbf16, #tpu.memory_space<vmem>>, vector<1x32x96xbf16>
      %79 = vector.shape_cast %78 : vector<1x32x96xbf16> to vector<32x96xbf16>
      %cst_47 = arith.constant dense<0.000000e+00> : vector<16x96xf32>
      %80 = tpu.matmul %76, %79, %cst_47 {dimension_numbers = #tpu.dot_dimension_numbers<[1], [0], [0], [1], [0, 0, 1, 1], [], []>} : vector<16x32xbf16>, vector<32x96xbf16>, vector<16x96xf32> -> vector<16x96xf32>
      %81 = arith.index_cast %48 : i32 to index
      %c0_48 = arith.constant 0 : index
      %c0_49 = arith.constant 0 : index
      %82 = vector.load %arg9[%81, %c0_48, %c0_49] : memref<2x1x96xf32, #tpu.memory_space<vmem>>, vector<1x1x96xf32>
      %83 = vector.shape_cast %82 : vector<1x1x96xf32> to vector<1x96xf32>
      %84 = vector.broadcast %83 : vector<1x96xf32> to vector<16x96xf32>
      %85 = arith.addf %80, %84 : vector<16x96xf32>
      %86 = vector.shape_cast %85 : vector<16x96xf32> to vector<1x16x96xf32>
      %87 = tpu.transpose %86, [0, 2, 1] : vector<1x16x96xf32> -> vector<1x96x16xf32>
      %88 = vector.shape_cast %87 : vector<1x96x16xf32> to vector<1x12x8x16xf32>
      %89 = vector.extract_strided_slice %88 {offsets = [0, 0, 0, 0], sizes = [1, 4, 8, 16], strides = [1, 1, 1, 1]} : vector<1x12x8x16xf32> to vector<1x4x8x16xf32>
      %90 = vector.shape_cast %89 : vector<1x4x8x16xf32> to vector<4x8x16xf32>
      %91 = vector.extract_strided_slice %88 {offsets = [0, 4, 0, 0], sizes = [1, 4, 8, 16], strides = [1, 1, 1, 1]} : vector<1x12x8x16xf32> to vector<1x4x8x16xf32>
      %92 = vector.shape_cast %91 : vector<1x4x8x16xf32> to vector<4x8x16xf32>
      %93 = vector.extract_strided_slice %88 {offsets = [0, 8, 0, 0], sizes = [1, 4, 8, 16], strides = [1, 1, 1, 1]} : vector<1x12x8x16xf32> to vector<1x4x8x16xf32>
      %94 = vector.shape_cast %93 : vector<1x4x8x16xf32> to vector<4x8x16xf32>
      %95 = tpu.transpose %90, [0, 2, 1] : vector<4x8x16xf32> -> vector<4x16x8xf32>
      %cst_50 = arith.constant 0.353553385 : f32
      %96 = vector.broadcast %cst_50 : f32 to vector<4x16x8xf32>
      %97 = arith.mulf %95, %96 : vector<4x16x8xf32>
      %98 = arith.truncf %97 : vector<4x16x8xf32> to vector<4x16x8xbf16>
      %99 = arith.truncf %92 : vector<4x8x16xf32> to vector<4x8x16xbf16>
      %100 = tpu.transpose %94, [0, 2, 1] : vector<4x8x16xf32> -> vector<4x16x8xf32>
      %101 = arith.truncf %100 : vector<4x16x8xf32> to vector<4x16x8xbf16>
      "tpu.trace_start"() <{level = 10 : i32, message = "gtd,gds->gts"}> : () -> ()
      %cst_51 = arith.constant dense<0.000000e+00> : vector<4x16x16xf32>
      %102 = tpu.matmul %98, %99, %cst_51 {dimension_numbers = #tpu.dot_dimension_numbers<[2], [1], [1], [2], [0, 0, 0, 1, 1, 2], [0], [0]>} : vector<4x16x8xbf16>, vector<4x8x16xbf16>, vector<4x16x16xf32> -> vector<4x16x16xf32>
      "tpu.trace_stop"() : () -> ()
      %103 = vector.shape_cast %14 : vector<16x16xf32> to vector<1x16x16xf32>
      %104 = vector.broadcast %103 : vector<1x16x16xf32> to vector<4x16x16xf32>
      %105 = arith.addf %102, %104 : vector<4x16x16xf32>
      %cst_52 = arith.constant dense<0xFF800000> : vector<4x16xf32>
      %106 = vector.multi_reduction <maximumf>, %105, %cst_52 [2] : vector<4x16x16xf32> to vector<4x16xf32>
      %107 = vector.shape_cast %106 : vector<4x16xf32> to vector<4x16x1xf32>
      %108 = vector.broadcast %107 : vector<4x16x1xf32> to vector<4x16x16xf32>
      %109 = arith.subf %105, %108 : vector<4x16x16xf32>
      %110 = math.exp %109 : vector<4x16x16xf32>
      %cst_53 = arith.constant dense<0.000000e+00> : vector<4x16xf32>
      %111 = vector.multi_reduction <add>, %110, %cst_53 [2] : vector<4x16x16xf32> to vector<4x16xf32>
      %112 = vector.shape_cast %111 : vector<4x16xf32> to vector<4x16x1xf32>
      %113 = tpu.reciprocal %112 {approx = true} : vector<4x16x1xf32> -> vector<4x16x1xf32>
      %114 = arith.truncf %110 : vector<4x16x16xf32> to vector<4x16x16xbf16>
      "tpu.trace_start"() <{level = 10 : i32, message = "gts,gsd->gtd"}> : () -> ()
      %cst_54 = arith.constant dense<0.000000e+00> : vector<4x16x8xf32>
      %115 = tpu.matmul %114, %101, %cst_54 {dimension_numbers = #tpu.dot_dimension_numbers<[2], [1], [1], [2], [0, 0, 0, 1, 1, 2], [0], [0]>} : vector<4x16x16xbf16>, vector<4x16x8xbf16>, vector<4x16x8xf32> -> vector<4x16x8xf32>
      "tpu.trace_stop"() : () -> ()
      %116 = vector.broadcast %113 : vector<4x16x1xf32> to vector<4x16x8xf32>
      %117 = arith.mulf %115, %116 : vector<4x16x8xf32>
      %118 = vector.shape_cast %117 : vector<4x16x8xf32> to vector<1x4x16x8xf32>
      %119 = tpu.transpose %118, [0, 1, 3, 2] : vector<1x4x16x8xf32> -> vector<1x4x8x16xf32>
      %120 = vector.shape_cast %119 : vector<1x4x8x16xf32> to vector<1x32x16xf32>
      %121 = tpu.transpose %120, [0, 2, 1] : vector<1x32x16xf32> -> vector<1x16x32xf32>
      %122 = vector.shape_cast %121 : vector<1x16x32xf32> to vector<16x32xf32>
      %123 = arith.truncf %122 : vector<16x32xf32> to vector<16x32xbf16>
      %124 = arith.index_cast %48 : i32 to index
      %c0_55 = arith.constant 0 : index
      %c0_56 = arith.constant 0 : index
      %125 = vector.load %arg10[%124, %c0_55, %c0_56] : memref<2x32x32xbf16, #tpu.memory_space<vmem>>, vector<1x32x32xbf16>
      %126 = vector.shape_cast %125 : vector<1x32x32xbf16> to vector<32x32xbf16>
      %cst_57 = arith.constant dense<0.000000e+00> : vector<16x32xf32>
      %127 = tpu.matmul %123, %126, %cst_57 {dimension_numbers = #tpu.dot_dimension_numbers<[1], [0], [0], [1], [0, 0, 1, 1], [], []>} : vector<16x32xbf16>, vector<32x32xbf16>, vector<16x32xf32> -> vector<16x32xf32>
      %128 = arith.index_cast %48 : i32 to index
      %c0_58 = arith.constant 0 : index
      %c0_59 = arith.constant 0 : index
      %129 = vector.load %arg11[%128, %c0_58, %c0_59] : memref<2x1x32xf32, #tpu.memory_space<vmem>>, vector<1x1x32xf32>
      %130 = vector.shape_cast %129 : vector<1x1x32xf32> to vector<1x32xf32>
      %131 = vector.broadcast %130 : vector<1x32xf32> to vector<16x32xf32>
      %132 = arith.addf %127, %131 : vector<16x32xf32>
      %133 = arith.addf %49, %132 : vector<16x32xf32>
      %134 = arith.index_cast %48 : i32 to index
      %c0_60 = arith.constant 0 : index
      %c0_61 = arith.constant 0 : index
      %135 = vector.load %arg12[%134, %c0_60, %c0_61] : memref<2x1x32xf32, #tpu.memory_space<vmem>>, vector<1x1x32xf32>
      %136 = vector.shape_cast %135 : vector<1x1x32xf32> to vector<1x32xf32>
      %137 = arith.index_cast %48 : i32 to index
      %c0_62 = arith.constant 0 : index
      %c0_63 = arith.constant 0 : index
      %138 = vector.load %arg13[%137, %c0_62, %c0_63] : memref<2x1x32xf32, #tpu.memory_space<vmem>>, vector<1x1x32xf32>
      %139 = vector.shape_cast %138 : vector<1x1x32xf32> to vector<1x32xf32>
      %cst_64 = arith.constant dense<0.000000e+00> : vector<16xf32>
      %140 = vector.multi_reduction <add>, %133, %cst_64 [1] : vector<16x32xf32> to vector<16xf32>
      %141 = vector.shape_cast %140 : vector<16xf32> to vector<16x1xf32>
      %cst_65 = arith.constant 3.200000e+01 : f32
      %142 = vector.broadcast %cst_65 : f32 to vector<16x1xf32>
      %143 = arith.divf %141, %142 : vector<16x1xf32>
      %144 = vector.broadcast %143 : vector<16x1xf32> to vector<16x32xf32>
      %145 = arith.subf %133, %144 : vector<16x32xf32>
      %146 = arith.mulf %145, %145 : vector<16x32xf32>
      %cst_66 = arith.constant dense<0.000000e+00> : vector<16xf32>
      %147 = vector.multi_reduction <add>, %146, %cst_66 [1] : vector<16x32xf32> to vector<16xf32>
      %148 = vector.shape_cast %147 : vector<16xf32> to vector<16x1xf32>
      %cst_67 = arith.constant 3.200000e+01 : f32
      %149 = vector.broadcast %cst_67 : f32 to vector<16x1xf32>
      %150 = arith.divf %148, %149 : vector<16x1xf32>
      %cst_68 = arith.constant 9.99999974E-6 : f32
      %151 = vector.broadcast %cst_68 : f32 to vector<16x1xf32>
      %152 = arith.addf %150, %151 : vector<16x1xf32>
      %153 = math.rsqrt %152 : vector<16x1xf32>
      %154 = vector.broadcast %153 : vector<16x1xf32> to vector<16x32xf32>
      %155 = arith.mulf %145, %154 : vector<16x32xf32>
      %156 = vector.broadcast %136 : vector<1x32xf32> to vector<16x32xf32>
      %157 = arith.mulf %155, %156 : vector<16x32xf32>
      %158 = vector.broadcast %139 : vector<1x32xf32> to vector<16x32xf32>
      %159 = arith.addf %157, %158 : vector<16x32xf32>
      %160 = arith.truncf %159 : vector<16x32xf32> to vector<16x32xbf16>
      %161 = arith.index_cast %48 : i32 to index
      %c0_69 = arith.constant 0 : index
      %c0_70 = arith.constant 0 : index
      %162 = vector.load %arg14[%161, %c0_69, %c0_70] : memref<2x32x128xbf16, #tpu.memory_space<vmem>>, vector<1x32x128xbf16>
      %163 = vector.shape_cast %162 : vector<1x32x128xbf16> to vector<32x128xbf16>
      %cst_71 = arith.constant dense<0.000000e+00> : vector<16x128xf32>
      %164 = tpu.matmul %160, %163, %cst_71 {dimension_numbers = #tpu.dot_dimension_numbers<[1], [0], [0], [1], [0, 0, 1, 1], [], []>} : vector<16x32xbf16>, vector<32x128xbf16>, vector<16x128xf32> -> vector<16x128xf32>
      %165 = arith.index_cast %48 : i32 to index
      %c0_72 = arith.constant 0 : index
      %c0_73 = arith.constant 0 : index
      %166 = vector.load %arg15[%165, %c0_72, %c0_73] : memref<2x1x128xf32, #tpu.memory_space<vmem>>, vector<1x1x128xf32>
      %167 = vector.shape_cast %166 : vector<1x1x128xf32> to vector<1x128xf32>
      %168 = vector.broadcast %167 : vector<1x128xf32> to vector<16x128xf32>
      %169 = arith.addf %164, %168 : vector<16x128xf32>
      %170 = arith.mulf %169, %169 : vector<16x128xf32>
      %171 = arith.mulf %169, %170 : vector<16x128xf32>
      %cst_74 = arith.constant 4.471500e-02 : f32
      %172 = vector.broadcast %cst_74 : f32 to vector<16x128xf32>
      %173 = arith.mulf %172, %171 : vector<16x128xf32>
      %174 = arith.addf %169, %173 : vector<16x128xf32>
      %cst_75 = arith.constant 0.797884583 : f32
      %175 = vector.broadcast %cst_75 : f32 to vector<16x128xf32>
      %176 = arith.mulf %175, %174 : vector<16x128xf32>
      %177 = math.tanh %176 : vector<16x128xf32>
      %cst_76 = arith.constant 1.000000e+00 : f32
      %178 = vector.broadcast %cst_76 : f32 to vector<16x128xf32>
      %179 = arith.addf %178, %177 : vector<16x128xf32>
      %cst_77 = arith.constant 5.000000e-01 : f32
      %180 = vector.broadcast %cst_77 : f32 to vector<16x128xf32>
      %181 = arith.mulf %180, %179 : vector<16x128xf32>
      %182 = arith.mulf %169, %181 : vector<16x128xf32>
      %183 = arith.truncf %182 : vector<16x128xf32> to vector<16x128xbf16>
      %184 = arith.index_cast %48 : i32 to index
      %c0_78 = arith.constant 0 : index
      %c0_79 = arith.constant 0 : index
      %185 = vector.load %arg16[%184, %c0_78, %c0_79] : memref<2x128x32xbf16, #tpu.memory_space<vmem>>, vector<1x128x32xbf16>
      %186 = vector.shape_cast %185 : vector<1x128x32xbf16> to vector<128x32xbf16>
      %cst_80 = arith.constant dense<0.000000e+00> : vector<16x32xf32>
      %187 = tpu.matmul %183, %186, %cst_80 {dimension_numbers = #tpu.dot_dimension_numbers<[1], [0], [0], [1], [0, 0, 1, 1], [], []>} : vector<16x128xbf16>, vector<128x32xbf16>, vector<16x32xf32> -> vector<16x32xf32>
      %188 = arith.index_cast %48 : i32 to index
      %c0_81 = arith.constant 0 : index
      %c0_82 = arith.constant 0 : index
      %189 = vector.load %arg17[%188, %c0_81, %c0_82] : memref<2x1x32xf32, #tpu.memory_space<vmem>>, vector<1x1x32xf32>
      %190 = vector.shape_cast %189 : vector<1x1x32xf32> to vector<1x32xf32>
      %191 = vector.broadcast %190 : vector<1x32xf32> to vector<16x32xf32>
      %192 = arith.addf %187, %191 : vector<16x32xf32>
      %193 = arith.addf %133, %192 : vector<16x32xf32>
      %c0_83 = arith.constant 0 : index
      %c0_84 = arith.constant 0 : index
      %194 = vector.load %arg23[%c0_83, %c0_84] : memref<16x32xf32, #tpu.memory_space<vmem>>, vector<16x32xf32>
      tpu.vector_store %arg23[%c0_83, %c0_84], %193 {strides = array<i32>} : memref<16x32xf32, #tpu.memory_space<vmem>>, vector<16x32xf32>,
    }
    %c2_i32_12 = arith.constant 2 : i32
    %c0_13 = arith.constant 0 : index
    %c0_14 = arith.constant 0 : index
    %16 = vector.load %arg23[%c0_13, %c0_14] : memref<16x32xf32, #tpu.memory_space<vmem>>, vector<16x32xf32>
    %c0_15 = arith.constant 0 : index
    %c0_16 = arith.constant 0 : index
    %17 = vector.load %arg18[%c0_15, %c0_16] : memref<1x32xf32, #tpu.memory_space<vmem>>, vector<1x32xf32>
    %c0_17 = arith.constant 0 : index
    %c0_18 = arith.constant 0 : index
    %18 = vector.load %arg19[%c0_17, %c0_18] : memref<1x32xf32, #tpu.memory_space<vmem>>, vector<1x32xf32>
    %cst_19 = arith.constant dense<0.000000e+00> : vector<16xf32>
    %19 = vector.multi_reduction <add>, %16, %cst_19 [1] : vector<16x32xf32> to vector<16xf32>
    %20 = vector.shape_cast %19 : vector<16xf32> to vector<16x1xf32>
    %cst_20 = arith.constant 3.200000e+01 : f32
    %21 = vector.broadcast %cst_20 : f32 to vector<16x1xf32>
    %22 = arith.divf %20, %21 : vector<16x1xf32>
    %23 = vector.broadcast %22 : vector<16x1xf32> to vector<16x32xf32>
    %24 = arith.subf %16, %23 : vector<16x32xf32>
    %25 = arith.mulf %24, %24 : vector<16x32xf32>
    %cst_21 = arith.constant dense<0.000000e+00> : vector<16xf32>
    %26 = vector.multi_reduction <add>, %25, %cst_21 [1] : vector<16x32xf32> to vector<16xf32>
    %27 = vector.shape_cast %26 : vector<16xf32> to vector<16x1xf32>
    %cst_22 = arith.constant 3.200000e+01 : f32
    %28 = vector.broadcast %cst_22 : f32 to vector<16x1xf32>
    %29 = arith.divf %27, %28 : vector<16x1xf32>
    %cst_23 = arith.constant 9.99999974E-6 : f32
    %30 = vector.broadcast %cst_23 : f32 to vector<16x1xf32>
    %31 = arith.addf %29, %30 : vector<16x1xf32>
    %32 = math.rsqrt %31 : vector<16x1xf32>
    %33 = vector.broadcast %32 : vector<16x1xf32> to vector<16x32xf32>
    %34 = arith.mulf %24, %33 : vector<16x32xf32>
    %35 = vector.broadcast %17 : vector<1x32xf32> to vector<16x32xf32>
    %36 = arith.mulf %34, %35 : vector<16x32xf32>
    %37 = vector.broadcast %18 : vector<1x32xf32> to vector<16x32xf32>
    %38 = arith.addf %36, %37 : vector<16x32xf32>
    %39 = arith.truncf %38 : vector<16x32xf32> to vector<16x32xbf16>
    %c0_24 = arith.constant 0 : index
    %c0_25 = arith.constant 0 : index
    %40 = vector.load %arg20[%c0_24, %c0_25] : memref<32x128xbf16, #tpu.memory_space<vmem>>, vector<32x128xbf16>
    %cst_26 = arith.constant dense<0.000000e+00> : vector<16x128xf32>
    %41 = tpu.matmul %39, %40, %cst_26 {dimension_numbers = #tpu.dot_dimension_numbers<[1], [0], [0], [1], [0, 0, 1, 1], [], []>} : vector<16x32xbf16>, vector<32x128xbf16>, vector<16x128xf32> -> vector<16x128xf32>
    %c0_27 = arith.constant 0 : index
    %c0_28 = arith.constant 0 : index
    %42 = vector.load %arg21[%c0_27, %c0_28] : memref<1x128xf32, #tpu.memory_space<vmem>>, vector<1x128xf32>
    %43 = vector.broadcast %42 : vector<1x128xf32> to vector<16x128xf32>
    %44 = arith.addf %41, %43 : vector<16x128xf32>
    %45 = vector.shape_cast %44 : vector<16x128xf32> to vector<1x16x128xf32>
    %c0_29 = arith.constant 0 : index
    %c0_30 = arith.constant 0 : index
    %c0_31 = arith.constant 0 : index
    %46 = vector.load %arg22[%c0_29, %c0_30, %c0_31] : memref<1x16x128xf32, #tpu.memory_space<vmem>>, vector<1x16x128xf32>
    tpu.vector_store %arg22[%c0_29, %c0_30, %c0_31], %45 {strides = array<i32>} : memref<1x16x128xf32, #tpu.memory_space<vmem>>, vector<1x16x128xf32>,
    return
  }
  func.func @transform_0(%arg0: i32) -> (i32, i32, i32) {
    %c0_i32 = arith.constant 0 : i32
    %c0_i32_0 = arith.constant 0 : i32
    %c0_i32_1 = arith.constant 0 : i32
    return %arg0, %c0_i32, %c0_i32_0 : i32, i32, i32
  }
  func.func @transform_1(%arg0: i32) -> (i32, i32) {
    %c0_i32 = arith.constant 0 : i32
    %c0_i32_0 = arith.constant 0 : i32
    %c0_i32_1 = arith.constant 0 : i32
    return %c0_i32, %c0_i32_0 : i32, i32
  }
  func.func @transform_2(%arg0: i32) -> (i32, i32) {
    %c0_i32 = arith.constant 0 : i32
    %c0_i32_0 = arith.constant 0 : i32
    %c0_i32_1 = arith.constant 0 : i32
    return %c0_i32, %c0_i32_0 : i32, i32
  }
  func.func @transform_3(%arg0: i32) -> (i32, i32) {
    %c0_i32 = arith.constant 0 : i32
    %c0_i32_0 = arith.constant 0 : i32
    %c0_i32_1 = arith.constant 0 : i32
    return %c0_i32, %c0_i32_0 : i32, i32
  }
  func.func @transform_4(%arg0: i32) -> (i32, i32) {
    %c0_i32 = arith.constant 0 : i32
    %c0_i32_0 = arith.constant 0 : i32
    %c0_i32_1 = arith.constant 0 : i32
    return %c0_i32, %c0_i32_0 : i32, i32
  }
  func.func @transform_5(%arg0: i32) -> (i32, i32, i32) {
    %c0_i32 = arith.constant 0 : i32
    %c0_i32_0 = arith.constant 0 : i32
    %c0_i32_1 = arith.constant 0 : i32
    %c0_i32_2 = arith.constant 0 : i32
    return %c0_i32, %c0_i32_0, %c0_i32_1 : i32, i32, i32
  }
  func.func @transform_6(%arg0: i32) -> (i32, i32, i32) {
    %c0_i32 = arith.constant 0 : i32
    %c0_i32_0 = arith.constant 0 : i32
    %c0_i32_1 = arith.constant 0 : i32
    %c0_i32_2 = arith.constant 0 : i32
    return %c0_i32, %c0_i32_0, %c0_i32_1 : i32, i32, i32
  }
  func.func @transform_7(%arg0: i32) -> (i32, i32, i32) {
    %c0_i32 = arith.constant 0 : i32
    %c0_i32_0 = arith.constant 0 : i32
    %c0_i32_1 = arith.constant 0 : i32
    %c0_i32_2 = arith.constant 0 : i32
    return %c0_i32, %c0_i32_0, %c0_i32_1 : i32, i32, i32
  }
  func.func @transform_8(%arg0: i32) -> (i32, i32, i32) {
    %c0_i32 = arith.constant 0 : i32
    %c0_i32_0 = arith.constant 0 : i32
    %c0_i32_1 = arith.constant 0 : i32
    %c0_i32_2 = arith.constant 0 : i32
    return %c0_i32, %c0_i32_0, %c0_i32_1 : i32, i32, i32
  }
  func.func @transform_9(%arg0: i32) -> (i32, i32, i32) {
    %c0_i32 = arith.constant 0 : i32
    %c0_i32_0 = arith.constant 0 : i32
    %c0_i32_1 = arith.constant 0 : i32
    %c0_i32_2 = arith.constant 0 : i32
    return %c0_i32, %c0_i32_0, %c0_i32_1 : i32, i32, i32
  }
  func.func @transform_10(%arg0: i32) -> (i32, i32, i32) {
    %c0_i32 = arith.constant 0 : i32
    %c0_i32_0 = arith.constant 0 : i32
    %c0_i32_1 = arith.constant 0 : i32
    %c0_i32_2 = arith.constant 0 : i32
    return %c0_i32, %c0_i32_0, %c0_i32_1 : i32, i32, i32
  }
  func.func @transform_11(%arg0: i32) -> (i32, i32, i32) {
    %c0_i32 = arith.constant 0 : i32
    %c0_i32_0 = arith.constant 0 : i32
    %c0_i32_1 = arith.constant 0 : i32
    %c0_i32_2 = arith.constant 0 : i32
    return %c0_i32, %c0_i32_0, %c0_i32_1 : i32, i32, i32
  }
  func.func @transform_12(%arg0: i32) -> (i32, i32, i32) {
    %c0_i32 = arith.constant 0 : i32
    %c0_i32_0 = arith.constant 0 : i32
    %c0_i32_1 = arith.constant 0 : i32
    %c0_i32_2 = arith.constant 0 : i32
    return %c0_i32, %c0_i32_0, %c0_i32_1 : i32, i32, i32
  }
  func.func @transform_13(%arg0: i32) -> (i32, i32, i32) {
    %c0_i32 = arith.constant 0 : i32
    %c0_i32_0 = arith.constant 0 : i32
    %c0_i32_1 = arith.constant 0 : i32
    %c0_i32_2 = arith.constant 0 : i32
    return %c0_i32, %c0_i32_0, %c0_i32_1 : i32, i32, i32
  }
  func.func @transform_14(%arg0: i32) -> (i32, i32, i32) {
    %c0_i32 = arith.constant 0 : i32
    %c0_i32_0 = arith.constant 0 : i32
    %c0_i32_1 = arith.constant 0 : i32
    %c0_i32_2 = arith.constant 0 : i32
    return %c0_i32, %c0_i32_0, %c0_i32_1 : i32, i32, i32
  }
  func.func @transform_15(%arg0: i32) -> (i32, i32, i32) {
    %c0_i32 = arith.constant 0 : i32
    %c0_i32_0 = arith.constant 0 : i32
    %c0_i32_1 = arith.constant 0 : i32
    %c0_i32_2 = arith.constant 0 : i32
    return %c0_i32, %c0_i32_0, %c0_i32_1 : i32, i32, i32
  }
  func.func @transform_16(%arg0: i32) -> (i32, i32, i32) {
    %c0_i32 = arith.constant 0 : i32
    %c0_i32_0 = arith.constant 0 : i32
    %c0_i32_1 = arith.constant 0 : i32
    %c0_i32_2 = arith.constant 0 : i32
    return %c0_i32, %c0_i32_0, %c0_i32_1 : i32, i32, i32
  }
  func.func @transform_17(%arg0: i32) -> (i32, i32) {
    %c0_i32 = arith.constant 0 : i32
    %c0_i32_0 = arith.constant 0 : i32
    %c0_i32_1 = arith.constant 0 : i32
    return %c0_i32, %c0_i32_0 : i32, i32
  }
  func.func @transform_18(%arg0: i32) -> (i32, i32) {
    %c0_i32 = arith.constant 0 : i32
    %c0_i32_0 = arith.constant 0 : i32
    %c0_i32_1 = arith.constant 0 : i32
    return %c0_i32, %c0_i32_0 : i32, i32
  }
  func.func @transform_19(%arg0: i32) -> (i32, i32) {
    %c0_i32 = arith.constant 0 : i32
    %c0_i32_0 = arith.constant 0 : i32
    %c0_i32_1 = arith.constant 0 : i32
    return %c0_i32, %c0_i32_0 : i32, i32
  }
  func.func @transform_20(%arg0: i32) -> (i32, i32) {
    %c0_i32 = arith.constant 0 : i32
    %c0_i32_0 = arith.constant 0 : i32
    %c0_i32_1 = arith.constant 0 : i32
    return %c0_i32, %c0_i32_0 : i32, i32
  }
  func.func @transform_21(%arg0: i32) -> (i32, i32, i32) {
    %c0_i32 = arith.constant 0 : i32
    %c0_i32_0 = arith.constant 0 : i32
    %c0_i32_1 = arith.constant 0 : i32
    return %arg0, %c0_i32, %c0_i32_0 : i32, i32, i32
  }
}

</mosaic_0001>

<llo_original>
// kernel: tpu_custom_call.1
$region0: #{tpu_custom_call.1}
  #allocation0 [shape = 'u32[]', space=smem, size = 0x4, offset = 0x4, fixed_abs, tag = 'smem constant byte address 0x4 - core index']
  #allocation1 [shape = 'u32[144,128]{1,0:T(1,128)}', space=vmem, size = 0x12000, scoped, tag = 'internal scratch']
  #allocation2 [shape = 'f32[16,32]{1,0:T(8,128)}', space=vmem, size = 0x2000, scoped, tag = 'scratch operand']
  %s0 = inlined_call_operand.vmem [shape: f32[2,16,8], index: 0, kind: input, shape index: {}]
  %s1 = inlined_call_operand.vmem [shape: f32[16,16], index: 1, kind: input, shape index: {}]
  %s2 = inlined_call_operand.vmem [shape: bf16[8,32], index: 2, kind: input, shape index: {}]
  %s3 = inlined_call_operand.vmem [shape: f32[1,32], index: 3, kind: input, shape index: {}]
  %s4 = inlined_call_operand.vmem [shape: f32[16,32], index: 4, kind: input, shape index: {}]
  %s5 = inlined_call_operand.vmem [shape: f32[2,1,32], index: 5, kind: input, shape index: {}]
  %s6 = inlined_call_operand.vmem [shape: f32[2,1,32], index: 6, kind: input, shape index: {}]
  %s7 = inlined_call_operand.vmem [shape: bf16[2,32,96], index: 7, kind: input, shape index: {}]
  %s8 = inlined_call_operand.vmem [shape: f32[2,1,96], index: 8, kind: input, shape index: {}]
  %s9 = inlined_call_operand.vmem [shape: bf16[2,32,32], index: 9, kind: input, shape index: {}]
  %s10 = inlined_call_operand.vmem [shape: f32[2,1,32], index: 10, kind: input, shape index: {}]
  %s11 = inlined_call_operand.vmem [shape: f32[2,1,32], index: 11, kind: input, shape index: {}]
  %s12 = inlined_call_operand.vmem [shape: f32[2,1,32], index: 12, kind: input, shape index: {}]
  %s13 = inlined_call_operand.vmem [shape: bf16[2,32,128], index: 13, kind: input, shape index: {}]
  %s14 = inlined_call_operand.vmem [shape: f32[2,1,128], index: 14, kind: input, shape index: {}]
  %s15 = inlined_call_operand.vmem [shape: bf16[2,128,32], index: 15, kind: input, shape index: {}]
  %s16 = inlined_call_operand.vmem [shape: f32[2,1,32], index: 16, kind: input, shape index: {}]
  %s17 = inlined_call_operand.vmem [shape: f32[1,32], index: 17, kind: input, shape index: {}]
  %s18 = inlined_call_operand.vmem [shape: f32[1,32], index: 18, kind: input, shape index: {}]
  %s19 = inlined_call_operand.vmem [shape: bf16[32,128], index: 19, kind: input, shape index: {}]
  %s20 = inlined_call_operand.vmem [shape: f32[1,128], index: 20, kind: input, shape index: {}]
  %s21 = inlined_call_operand.hbm [shape: f32[2,16,128], index: 21, kind: output, shape index: {}]
  %s22 = sld [smem:[#allocation0]]
  $region124: #{tpu_custom_call.1} parent=0
    _
  %s24 = ssub.s32 1, %s22
  %s25 = scalar_select 0, %s24, %s22
  $region1: #{tpu_custom_call.1} parent=0
    #allocation3 [shape = 'u8[16384]{0}', space=vmem, size = 0x4000, scoped, tag = 'output window, operand 0']
    #allocation4 [shape = 's32[2]{0}', space=sflag, size = 0x8, scoped, tag = 'scoped memory for tpu_custom_call.1']
    %26 = vsyncpa [#allocation4], 0
    %s27 = scalar_lea.sflag [#allocation4], 1
    %28 = vsyncpa %s27, 0
    loop: start=0, step=1, limit=4
    $region2: #{tpu_custom_call.1} parent=1 // loop_pre_header
      _
    $region3: #{tpu_custom_call.1} parent=1 // loop_header
      %s30 = sphi 0, %s34
      %p31 = scmp.ge.s32.totalorder %s30, 4
      %s40 = sphi 0, %s42
      %s43 = sphi 0, %s40
      %s44 = sphi 0, %s43
      %s60 = sphi 0, %s44
      %s64 = sphi 0, %s64
      %s66 = sphi 0, %s64
      %s67 = sphi 0, %s66
      %s81 = sphi 0, %s67
      %s85 = sphi 0, %s85
      %s87 = sphi 0, %s85
      %s88 = sphi 0, %s87
      %s102 = sphi 0, %s88
      %s106 = sphi 0, %s106
      %s108 = sphi 0, %s106
      %s109 = sphi 0, %s108
      %s123 = sphi 0, %s109
      %s127 = sphi 0, %s127
      %s129 = sphi 0, %s127
      %s130 = sphi 0, %s129
      %s144 = sphi 0, %s130
      %s148 = sphi 0, %s148
      %s150 = sphi 0, %s148
      %s151 = sphi 0, %s150
      %s165 = sphi 0, %s151
      %s169 = sphi 0, %s169
      %s171 = sphi 0, %s169
      %s172 = sphi 0, %s171
      %s186 = sphi 0, %s172
      %s190 = sphi 0, %s190
      %s192 = sphi 0, %s190
      %s193 = sphi 0, %s192
      %s207 = sphi 0, %s193
      %s211 = sphi 0, %s211
      %s213 = sphi 0, %s211
      %s214 = sphi 0, %s213
      %s228 = sphi 0, %s214
      %s232 = sphi 0, %s232
      %s234 = sphi 0, %s232
      %s235 = sphi 0, %s234
      %s249 = sphi 0, %s235
      %s253 = sphi 0, %s253
      %s255 = sphi 0, %s253
      %s256 = sphi 0, %s255
      %s270 = sphi 0, %s256
      %s274 = sphi 0, %s274
      %s276 = sphi 0, %s274
      %s277 = sphi 0, %s276
      %s291 = sphi 0, %s277
      %s295 = sphi 0, %s295
      %s297 = sphi 0, %s295
      %s298 = sphi 0, %s297
      %s312 = sphi 0, %s298
      %s316 = sphi 0, %s316
      %s318 = sphi 0, %s316
      %s319 = sphi 0, %s318
      %s333 = sphi 0, %s319
      %s337 = sphi 0, %s337
      %s339 = sphi 0, %s337
      %s340 = sphi 0, %s339
      %s354 = sphi 0, %s340
      %s358 = sphi 0, %s358
      %s360 = sphi 0, %s358
      %s361 = sphi 0, %s360
      %s375 = sphi 0, %s361
      %s379 = sphi 0, %s379
      %s381 = sphi 0, %s379
      %s382 = sphi 0, %s381
      %s396 = sphi 0, %s382
      %s400 = sphi 0, %s400
      %s402 = sphi 0, %s400
      %s403 = sphi 0, %s402
      %s417 = sphi 0, %s403
      %s421 = sphi 0, %s421
      %s423 = sphi 0, %s421
      %s424 = sphi 0, %s423
      %s438 = sphi 0, %s424
      %s442 = sphi 0, %s442
      %s444 = sphi 0, %s442
      %s445 = sphi 0, %s444
      %s459 = sphi 0, %s445
      %s463 = sphi 0, %s463
      %s465 = sphi 0, %s463
      %s466 = sphi 0, %s465
      %s480 = sphi 0, %s466
      %s486 = sphi 0, %s488
      %s489 = sphi 0, %s486
      %s490 = sphi 0, %s489
      %s506 = sphi 0, %s490
    $region4: #{tpu_custom_call.1} parent=1 // loop_header_branch
      %33 = sbr.rel (%p31) target = $region8
    $region5: #{tpu_custom_call.1} parent=1 // loop_body
      %s35 = ssub.s32 %s30, 1
      %s36 = ssub.s32 %s30, 2
      %s37 = sadd.s32 %s30, 1
      %s38 = ssub.s32 %s30, %s37
      %p39 = scmp.eq.s32.totalorder %s38, 0
      %s41 = sadd.s32 %s40, 1
      %s42 = scalar_select %p39, %s40, %s41
      %p45 = pneg %p39
      %p46 = scmp.eq.s32.totalorder %s30, 1
      %p47 = por %p45, %p46
      %p48 = scmp.ne.s32.totalorder %s40, %s43
      %p49 = scmp.eq.s32.totalorder %s30, 0
      %p50 = por %p48, %p49
      %p51 = scmp.ne.s32.totalorder %s40, %s43
      %p52 = scmp.eq.s32.totalorder %s35, 1
      %p53 = por %p51, %p52
      %p54 = scmp.ne.s32.totalorder %s43, %s44
      %p55 = scmp.eq.s32.totalorder %s35, 0
      %p56 = por %p54, %p55
      %p57 = scmp.ne.s32.totalorder %s43, %s44
      %p58 = scmp.eq.s32.totalorder %s36, 1
      %p59 = por %p57, %p58
      %p61 = scmp.ne.s32.totalorder %s44, %s60
      %p62 = scmp.eq.s32.totalorder %s36, 0
      %p63 = por %p61, %p62
      %s65 = sadd.s32 %s64, 1
      %p68 = scmp.eq.s32.totalorder %s30, 1
      %p69 = scmp.ne.s32.totalorder %s64, %s66
      %p70 = scmp.eq.s32.totalorder %s30, 0
      %p71 = por %p69, %p70
      %p72 = scmp.ne.s32.totalorder %s64, %s66
      %p73 = scmp.eq.s32.totalorder %s35, 1
      %p74 = por %p72, %p73
      %p75 = scmp.ne.s32.totalorder %s66, %s67
      %p76 = scmp.eq.s32.totalorder %s35, 0
      %p77 = por %p75, %p76
      %p78 = scmp.ne.s32.totalorder %s66, %s67
      %p79 = scmp.eq.s32.totalorder %s36, 1
      %p80 = por %p78, %p79
      %p82 = scmp.ne.s32.totalorder %s67, %s81
      %p83 = scmp.eq.s32.totalorder %s36, 0
      %p84 = por %p82, %p83
      %s86 = sadd.s32 %s85, 1
      %p89 = scmp.eq.s32.totalorder %s30, 1
      %p90 = scmp.ne.s32.totalorder %s85, %s87
      %p91 = scmp.eq.s32.totalorder %s30, 0
      %p92 = por %p90, %p91
      %p93 = scmp.ne.s32.totalorder %s85, %s87
      %p94 = scmp.eq.s32.totalorder %s35, 1
      %p95 = por %p93, %p94
      %p96 = scmp.ne.s32.totalorder %s87, %s88
      %p97 = scmp.eq.s32.totalorder %s35, 0
      %p98 = por %p96, %p97
      %p99 = scmp.ne.s32.totalorder %s87, %s88
      %p100 = scmp.eq.s32.totalorder %s36, 1
      %p101 = por %p99, %p100
      %p103 = scmp.ne.s32.totalorder %s88, %s102
      %p104 = scmp.eq.s32.totalorder %s36, 0
      %p105 = por %p103, %p104
      %s107 = sadd.s32 %s106, 1
      %p110 = scmp.eq.s32.totalorder %s30, 1
      %p111 = scmp.ne.s32.totalorder %s106, %s108
      %p112 = scmp.eq.s32.totalorder %s30, 0
      %p113 = por %p111, %p112
      %p114 = scmp.ne.s32.totalorder %s106, %s108
      %p115 = scmp.eq.s32.totalorder %s35, 1
      %p116 = por %p114, %p115
      %p117 = scmp.ne.s32.totalorder %s108, %s109
      %p118 = scmp.eq.s32.totalorder %s35, 0
      %p119 = por %p117, %p118
      %p120 = scmp.ne.s32.totalorder %s108, %s109
      %p121 = scmp.eq.s32.totalorder %s36, 1
      %p122 = por %p120, %p121
      %p124 = scmp.ne.s32.totalorder %s109, %s123
      %p125 = scmp.eq.s32.totalorder %s36, 0
      %p126 = por %p124, %p125
      %s128 = sadd.s32 %s127, 1
      %p131 = scmp.eq.s32.totalorder %s30, 1
      %p132 = scmp.ne.s32.totalorder %s127, %s129
      %p133 = scmp.eq.s32.totalorder %s30, 0
      %p134 = por %p132, %p133
      %p135 = scmp.ne.s32.totalorder %s127, %s129
      %p136 = scmp.eq.s32.totalorder %s35, 1
      %p137 = por %p135, %p136
      %p138 = scmp.ne.s32.totalorder %s129, %s130
      %p139 = scmp.eq.s32.totalorder %s35, 0
      %p140 = por %p138, %p139
      %p141 = scmp.ne.s32.totalorder %s129, %s130
      %p142 = scmp.eq.s32.totalorder %s36, 1
      %p143 = por %p141, %p142
      %p145 = scmp.ne.s32.totalorder %s130, %s144
      %p146 = scmp.eq.s32.totalorder %s36, 0
      %p147 = por %p145, %p146
      %s149 = sadd.s32 %s148, 1
      %p152 = scmp.eq.s32.totalorder %s30, 1
      %p153 = scmp.ne.s32.totalorder %s148, %s150
      %p154 = scmp.eq.s32.totalorder %s30, 0
      %p155 = por %p153, %p154
      %p156 = scmp.ne.s32.totalorder %s148, %s150
      %p157 = scmp.eq.s32.totalorder %s35, 1
      %p158 = por %p156, %p157
      %p159 = scmp.ne.s32.totalorder %s150, %s151
      %p160 = scmp.eq.s32.totalorder %s35, 0
      %p161 = por %p159, %p160
      %p162 = scmp.ne.s32.totalorder %s150, %s151
      %p163 = scmp.eq.s32.totalorder %s36, 1
      %p164 = por %p162, %p163
      %p166 = scmp.ne.s32.totalorder %s151, %s165
      %p167 = scmp.eq.s32.totalorder %s36, 0
      %p168 = por %p166, %p167
      %s170 = sadd.s32 %s169, 1
      %p173 = scmp.eq.s32.totalorder %s30, 1
      %p174 = scmp.ne.s32.totalorder %s169, %s171
      %p175 = scmp.eq.s32.totalorder %s30, 0
      %p176 = por %p174, %p175
      %p177 = scmp.ne.s32.totalorder %s169, %s171
      %p178 = scmp.eq.s32.totalorder %s35, 1
      %p179 = por %p177, %p178
      %p180 = scmp.ne.s32.totalorder %s171, %s172
      %p181 = scmp.eq.s32.totalorder %s35, 0
      %p182 = por %p180, %p181
      %p183 = scmp.ne.s32.totalorder %s171, %s172
      %p184 = scmp.eq.s32.totalorder %s36, 1
      %p185 = por %p183, %p184
      %p187 = scmp.ne.s32.totalorder %s172, %s186
      %p188 = scmp.eq.s32.totalorder %s36, 0
      %p189 = por %p187, %p188
      %s191 = sadd.s32 %s190, 1
      %p194 = scmp.eq.s32.totalorder %s30, 1
      %p195 = scmp.ne.s32.totalorder %s190, %s192
      %p196 = scmp.eq.s32.totalorder %s30, 0
      %p197 = por %p195, %p196
      %p198 = scmp.ne.s32.totalorder %s190, %s192
      %p199 = scmp.eq.s32.totalorder %s35, 1
      %p200 = por %p198, %p199
      %p201 = scmp.ne.s32.totalorder %s192, %s193
      %p202 = scmp.eq.s32.totalorder %s35, 0
      %p203 = por %p201, %p202
      %p204 = scmp.ne.s32.totalorder %s192, %s193
      %p205 = scmp.eq.s32.totalorder %s36, 1
      %p206 = por %p204, %p205
      %p208 = scmp.ne.s32.totalorder %s193, %s207
      %p209 = scmp.eq.s32.totalorder %s36, 0
      %p210 = por %p208, %p209
      %s212 = sadd.s32 %s211, 1
      %p215 = scmp.eq.s32.totalorder %s30, 1
      %p216 = scmp.ne.s32.totalorder %s211, %s213
      %p217 = scmp.eq.s32.totalorder %s30, 0
      %p218 = por %p216, %p217
      %p219 = scmp.ne.s32.totalorder %s211, %s213
      %p220 = scmp.eq.s32.totalorder %s35, 1
      %p221 = por %p219, %p220
      %p222 = scmp.ne.s32.totalorder %s213, %s214
      %p223 = scmp.eq.s32.totalorder %s35, 0
      %p224 = por %p222, %p223
      %p225 = scmp.ne.s32.totalorder %s213, %s214
      %p226 = scmp.eq.s32.totalorder %s36, 1
      %p227 = por %p225, %p226
      %p229 = scmp.ne.s32.totalorder %s214, %s228
      %p230 = scmp.eq.s32.totalorder %s36, 0
      %p231 = por %p229, %p230
      %s233 = sadd.s32 %s232, 1
      %p236 = scmp.eq.s32.totalorder %s30, 1
      %p237 = scmp.ne.s32.totalorder %s232, %s234
      %p238 = scmp.eq.s32.totalorder %s30, 0
      %p239 = por %p237, %p238
      %p240 = scmp.ne.s32.totalorder %s232, %s234
      %p241 = scmp.eq.s32.totalorder %s35, 1
      %p242 = por %p240, %p241
      %p243 = scmp.ne.s32.totalorder %s234, %s235
      %p244 = scmp.eq.s32.totalorder %s35, 0
      %p245 = por %p243, %p244
      %p246 = scmp.ne.s32.totalorder %s234, %s235
      %p247 = scmp.eq.s32.totalorder %s36, 1
      %p248 = por %p246, %p247
      %p250 = scmp.ne.s32.totalorder %s235, %s249
      %p251 = scmp.eq.s32.totalorder %s36, 0
      %p252 = por %p250, %p251
      %s254 = sadd.s32 %s253, 1
      %p257 = scmp.eq.s32.totalorder %s30, 1
      %p258 = scmp.ne.s32.totalorder %s253, %s255
      %p259 = scmp.eq.s32.totalorder %s30, 0
      %p260 = por %p258, %p259
      %p261 = scmp.ne.s32.totalorder %s253, %s255
      %p262 = scmp.eq.s32.totalorder %s35, 1
      %p263 = por %p261, %p262
      %p264 = scmp.ne.s32.totalorder %s255, %s256
      %p265 = scmp.eq.s32.totalorder %s35, 0
      %p266 = por %p264, %p265
      %p267 = scmp.ne.s32.totalorder %s255, %s256
      %p268 = scmp.eq.s32.totalorder %s36, 1
      %p269 = por %p267, %p268
      %p271 = scmp.ne.s32.totalorder %s256, %s270
      %p272 = scmp.eq.s32.totalorder %s36, 0
      %p273 = por %p271, %p272
      %s275 = sadd.s32 %s274, 1
      %p278 = scmp.eq.s32.totalorder %s30, 1
      %p279 = scmp.ne.s32.totalorder %s274, %s276
      %p280 = scmp.eq.s32.totalorder %s30, 0
      %p281 = por %p279, %p280
      %p282 = scmp.ne.s32.totalorder %s274, %s276
      %p283 = scmp.eq.s32.totalorder %s35, 1
      %p284 = por %p282, %p283
      %p285 = scmp.ne.s32.totalorder %s276, %s277
      %p286 = scmp.eq.s32.totalorder %s35, 0
      %p287 = por %p285, %p286
      %p288 = scmp.ne.s32.totalorder %s276, %s277
      %p289 = scmp.eq.s32.totalorder %s36, 1
      %p290 = por %p288, %p289
      %p292 = scmp.ne.s32.totalorder %s277, %s291
      %p293 = scmp.eq.s32.totalorder %s36, 0
      %p294 = por %p292, %p293
      %s296 = sadd.s32 %s295, 1
      %p299 = scmp.eq.s32.totalorder %s30, 1
      %p300 = scmp.ne.s32.totalorder %s295, %s297
      %p301 = scmp.eq.s32.totalorder %s30, 0
      %p302 = por %p300, %p301
      %p303 = scmp.ne.s32.totalorder %s295, %s297
      %p304 = scmp.eq.s32.totalorder %s35, 1
      %p305 = por %p303, %p304
      %p306 = scmp.ne.s32.totalorder %s297, %s298
      %p307 = scmp.eq.s32.totalorder %s35, 0
      %p308 = por %p306, %p307
      %p309 = scmp.ne.s32.totalorder %s297, %s298
      %p310 = scmp.eq.s32.totalorder %s36, 1
      %p311 = por %p309, %p310
      %p313 = scmp.ne.s32.totalorder %s298, %s312
      %p314 = scmp.eq.s32.totalorder %s36, 0
      %p315 = por %p313, %p314
      %s317 = sadd.s32 %s316, 1
      %p320 = scmp.eq.s32.totalorder %s30, 1
      %p321 = scmp.ne.s32.totalorder %s316, %s318
      %p322 = scmp.eq.s32.totalorder %s30, 0
      %p323 = por %p321, %p322
      %p324 = scmp.ne.s32.totalorder %s316, %s318
      %p325 = scmp.eq.s32.totalorder %s35, 1
      %p326 = por %p324, %p325
      %p327 = scmp.ne.s32.totalorder %s318, %s319
      %p328 = scmp.eq.s32.totalorder %s35, 0
      %p329 = por %p327, %p328
      %p330 = scmp.ne.s32.totalorder %s318, %s319
      %p331 = scmp.eq.s32.totalorder %s36, 1
      %p332 = por %p330, %p331
      %p334 = scmp.ne.s32.totalorder %s319, %s333
      %p335 = scmp.eq.s32.totalorder %s36, 0
      %p336 = por %p334, %p335
      %s338 = sadd.s32 %s337, 1
      %p341 = scmp.eq.s32.totalorder %s30, 1
      %p342 = scmp.ne.s32.totalorder %s337, %s339
      %p343 = scmp.eq.s32.totalorder %s30, 0
      %p344 = por %p342, %p343
      %p345 = scmp.ne.s32.totalorder %s337, %s339
      %p346 = scmp.eq.s32.totalorder %s35, 1
      %p347 = por %p345, %p346
      %p348 = scmp.ne.s32.totalorder %s339, %s340
      %p349 = scmp.eq.s32.totalorder %s35, 0
      %p350 = por %p348, %p349
      %p351 = scmp.ne.s32.totalorder %s339, %s340
      %p352 = scmp.eq.s32.totalorder %s36, 1
      %p353 = por %p351, %p352
      %p355 = scmp.ne.s32.totalorder %s340, %s354
      %p356 = scmp.eq.s32.totalorder %s36, 0
      %p357 = por %p355, %p356
      %s359 = sadd.s32 %s358, 1
      %p362 = scmp.eq.s32.totalorder %s30, 1
      %p363 = scmp.ne.s32.totalorder %s358, %s360
      %p364 = scmp.eq.s32.totalorder %s30, 0
      %p365 = por %p363, %p364
      %p366 = scmp.ne.s32.totalorder %s358, %s360
      %p367 = scmp.eq.s32.totalorder %s35, 1
      %p368 = por %p366, %p367
      %p369 = scmp.ne.s32.totalorder %s360, %s361
      %p370 = scmp.eq.s32.totalorder %s35, 0
      %p371 = por %p369, %p370
      %p372 = scmp.ne.s32.totalorder %s360, %s361
      %p373 = scmp.eq.s32.totalorder %s36, 1
      %p374 = por %p372, %p373
      %p376 = scmp.ne.s32.totalorder %s361, %s375
      %p377 = scmp.eq.s32.totalorder %s36, 0
      %p378 = por %p376, %p377
      %s380 = sadd.s32 %s379, 1
      %p383 = scmp.eq.s32.totalorder %s30, 1
      %p384 = scmp.ne.s32.totalorder %s379, %s381
      %p385 = scmp.eq.s32.totalorder %s30, 0
      %p386 = por %p384, %p385
      %p387 = scmp.ne.s32.totalorder %s379, %s381
      %p388 = scmp.eq.s32.totalorder %s35, 1
      %p389 = por %p387, %p388
      %p390 = scmp.ne.s32.totalorder %s381, %s382
      %p391 = scmp.eq.s32.totalorder %s35, 0
      %p392 = por %p390, %p391
      %p393 = scmp.ne.s32.totalorder %s381, %s382
      %p394 = scmp.eq.s32.totalorder %s36, 1
      %p395 = por %p393, %p394
      %p397 = scmp.ne.s32.totalorder %s382, %s396
      %p398 = scmp.eq.s32.totalorder %s36, 0
      %p399 = por %p397, %p398
      %s401 = sadd.s32 %s400, 1
      %p404 = scmp.eq.s32.totalorder %s30, 1
      %p405 = scmp.ne.s32.totalorder %s400, %s402
      %p406 = scmp.eq.s32.totalorder %s30, 0
      %p407 = por %p405, %p406
      %p408 = scmp.ne.s32.totalorder %s400, %s402
      %p409 = scmp.eq.s32.totalorder %s35, 1
      %p410 = por %p408, %p409
      %p411 = scmp.ne.s32.totalorder %s402, %s403
      %p412 = scmp.eq.s32.totalorder %s35, 0
      %p413 = por %p411, %p412
      %p414 = scmp.ne.s32.totalorder %s402, %s403
      %p415 = scmp.eq.s32.totalorder %s36, 1
      %p416 = por %p414, %p415
      %p418 = scmp.ne.s32.totalorder %s403, %s417
      %p419 = scmp.eq.s32.totalorder %s36, 0
      %p420 = por %p418, %p419
      %s422 = sadd.s32 %s421, 1
      %p425 = scmp.eq.s32.totalorder %s30, 1
      %p426 = scmp.ne.s32.totalorder %s421, %s423
      %p427 = scmp.eq.s32.totalorder %s30, 0
      %p428 = por %p426, %p427
      %p429 = scmp.ne.s32.totalorder %s421, %s423
      %p430 = scmp.eq.s32.totalorder %s35, 1
      %p431 = por %p429, %p430
      %p432 = scmp.ne.s32.totalorder %s423, %s424
      %p433 = scmp.eq.s32.totalorder %s35, 0
      %p434 = por %p432, %p433
      %p435 = scmp.ne.s32.totalorder %s423, %s424
      %p436 = scmp.eq.s32.totalorder %s36, 1
      %p437 = por %p435, %p436
      %p439 = scmp.ne.s32.totalorder %s424, %s438
      %p440 = scmp.eq.s32.totalorder %s36, 0
      %p441 = por %p439, %p440
      %s443 = sadd.s32 %s442, 1
      %p446 = scmp.eq.s32.totalorder %s30, 1
      %p447 = scmp.ne.s32.totalorder %s442, %s444
      %p448 = scmp.eq.s32.totalorder %s30, 0
      %p449 = por %p447, %p448
      %p450 = scmp.ne.s32.totalorder %s442, %s444
      %p451 = scmp.eq.s32.totalorder %s35, 1
      %p452 = por %p450, %p451
      %p453 = scmp.ne.s32.totalorder %s444, %s445
      %p454 = scmp.eq.s32.totalorder %s35, 0
      %p455 = por %p453, %p454
      %p456 = scmp.ne.s32.totalorder %s444, %s445
      %p457 = scmp.eq.s32.totalorder %s36, 1
      %p458 = por %p456, %p457
      %p460 = scmp.ne.s32.totalorder %s445, %s459
      %p461 = scmp.eq.s32.totalorder %s36, 0
      %p462 = por %p460, %p461
      %s464 = sadd.s32 %s463, 1
      %p467 = scmp.eq.s32.totalorder %s30, 1
      %p468 = scmp.ne.s32.totalorder %s463, %s465
      %p469 = scmp.eq.s32.totalorder %s30, 0
      %p470 = por %p468, %p469
      %p471 = scmp.ne.s32.totalorder %s463, %s465
      %p472 = scmp.eq.s32.totalorder %s35, 1
      %p473 = por %p471, %p472
      %p474 = scmp.ne.s32.totalorder %s465, %s466
      %p475 = scmp.eq.s32.totalorder %s35, 0
      %p476 = por %p474, %p475
      %p477 = scmp.ne.s32.totalorder %s465, %s466
      %p478 = scmp.eq.s32.totalorder %s36, 1
      %p479 = por %p477, %p478
      %p481 = scmp.ne.s32.totalorder %s466, %s480
      %p482 = scmp.eq.s32.totalorder %s36, 0
      %p483 = por %p481, %p482
      %s484 = ssub.s32 %s30, %s37
      %p485 = scmp.eq.s32.totalorder %s484, 0
      %s487 = sadd.s32 %s486, 1
      %s488 = scalar_select %p485, %s486, %s487
      %p491 = pneg %p485
      %p492 = scmp.eq.s32.totalorder %s30, 1
      %p493 = por %p491, %p492
      %p494 = scmp.ne.s32.totalorder %s486, %s489
      %p495 = scmp.eq.s32.totalorder %s30, 0
      %p496 = por %p494, %p495
      %p497 = scmp.ne.s32.totalorder %s486, %s489
      %p498 = scmp.eq.s32.totalorder %s35, 1
      %p499 = por %p497, %p498
      %p500 = scmp.ne.s32.totalorder %s489, %s490
      %p501 = scmp.eq.s32.totalorder %s35, 0
      %p502 = por %p500, %p501
      %p503 = scmp.ne.s32.totalorder %s489, %s490
      %p504 = scmp.eq.s32.totalorder %s36, 1
      %p505 = por %p503, %p504
      %p507 = scmp.ne.s32.totalorder %s490, %s506
      %p508 = scmp.eq.s32.totalorder %s36, 0
      %p509 = por %p507, %p508
      %p510 = scmp.le.s32.totalorder 1, %s30
      %p511 = scmp.lt.s32.totalorder %s30, 3
      %p512 = pnand %p510, %p511
      %p513 = pneg %p512
      // Predicated region
      $region9: #{tpu_custom_call.1} parent=5 // pred_check
        _
      $region10: #{tpu_custom_call.1} parent=5 // pred_check_branch
        %515 = sbr.rel (%p512) target = $region12
      $region11: #{tpu_custom_call.1} parent=5 // pred_region
        %s516 = ssub.s32 %s30, 1
        // Predicated region
        $region13: #{tpu_custom_call.1} parent=11 // pred_check
          %p517 = pneg %p77
        $region14: #{tpu_custom_call.1} parent=11 // pred_check_branch
          %519 = sbr.rel (%p517) target = $region16
        $region15: #{tpu_custom_call.1} parent=11 // pred_region
          _
        $region16: #{tpu_custom_call.1} parent=11 // pred_fallthru
          _
        // Predicated region
        $region17: #{tpu_custom_call.1} parent=11 // pred_check
          %p520 = pneg %p98
        $region18: #{tpu_custom_call.1} parent=11 // pred_check_branch
          %522 = sbr.rel (%p520) target = $region20
        $region19: #{tpu_custom_call.1} parent=11 // pred_region
          _
        $region20: #{tpu_custom_call.1} parent=11 // pred_fallthru
          _
        // Predicated region
        $region21: #{tpu_custom_call.1} parent=11 // pred_check
          %p523 = pneg %p119
        $region22: #{tpu_custom_call.1} parent=11 // pred_check_branch
          %525 = sbr.rel (%p523) target = $region24
        $region23: #{tpu_custom_call.1} parent=11 // pred_region
          _
        $region24: #{tpu_custom_call.1} parent=11 // pred_fallthru
          _
        // Predicated region
        $region25: #{tpu_custom_call.1} parent=11 // pred_check
          %p526 = pneg %p140
        $region26: #{tpu_custom_call.1} parent=11 // pred_check_branch
          %528 = sbr.rel (%p526) target = $region28
        $region27: #{tpu_custom_call.1} parent=11 // pred_region
          _
        $region28: #{tpu_custom_call.1} parent=11 // pred_fallthru
          _
        // Predicated region
        $region29: #{tpu_custom_call.1} parent=11 // pred_check
          %p529 = pneg %p161
        $region30: #{tpu_custom_call.1} parent=11 // pred_check_branch
          %531 = sbr.rel (%p529) target = $region32
        $region31: #{tpu_custom_call.1} parent=11 // pred_region
          _
        $region32: #{tpu_custom_call.1} parent=11 // pred_fallthru
          _
        // Predicated region
        $region33: #{tpu_custom_call.1} parent=11 // pred_check
          %p532 = pneg %p182
        $region34: #{tpu_custom_call.1} parent=11 // pred_check_branch
          %534 = sbr.rel (%p532) target = $region36
        $region35: #{tpu_custom_call.1} parent=11 // pred_region
          _
        $region36: #{tpu_custom_call.1} parent=11 // pred_fallthru
          _
        // Predicated region
        $region37: #{tpu_custom_call.1} parent=11 // pred_check
          %p535 = pneg %p203
        $region38: #{tpu_custom_call.1} parent=11 // pred_check_branch
          %537 = sbr.rel (%p535) target = $region40
        $region39: #{tpu_custom_call.1} parent=11 // pred_region
          _
        $region40: #{tpu_custom_call.1} parent=11 // pred_fallthru
          _
        // Predicated region
        $region41: #{tpu_custom_call.1} parent=11 // pred_check
          %p538 = pneg %p224
        $region42: #{tpu_custom_call.1} parent=11 // pred_check_branch
          %540 = sbr.rel (%p538) target = $region44
        $region43: #{tpu_custom_call.1} parent=11 // pred_region
          _
        $region44: #{tpu_custom_call.1} parent=11 // pred_fallthru
          _
        // Predicated region
        $region45: #{tpu_custom_call.1} parent=11 // pred_check
          %p541 = pneg %p245
        $region46: #{tpu_custom_call.1} parent=11 // pred_check_branch
          %543 = sbr.rel (%p541) target = $region48
        $region47: #{tpu_custom_call.1} parent=11 // pred_region
          _
        $region48: #{tpu_custom_call.1} parent=11 // pred_fallthru
          _
        // Predicated region
        $region49: #{tpu_custom_call.1} parent=11 // pred_check
          %p544 = pneg %p266
        $region50: #{tpu_custom_call.1} parent=11 // pred_check_branch
          %546 = sbr.rel (%p544) target = $region52
        $region51: #{tpu_custom_call.1} parent=11 // pred_region
          _
        $region52: #{tpu_custom_call.1} parent=11 // pred_fallthru
          _
        // Predicated region
        $region53: #{tpu_custom_call.1} parent=11 // pred_check
          %p547 = pneg %p287
        $region54: #{tpu_custom_call.1} parent=11 // pred_check_branch
          %549 = sbr.rel (%p547) target = $region56
        $region55: #{tpu_custom_call.1} parent=11 // pred_region
          _
        $region56: #{tpu_custom_call.1} parent=11 // pred_fallthru
          _
        // Predicated region
        $region57: #{tpu_custom_call.1} parent=11 // pred_check
          %p550 = pneg %p308
        $region58: #{tpu_custom_call.1} parent=11 // pred_check_branch
          %552 = sbr.rel (%p550) target = $region60
        $region59: #{tpu_custom_call.1} parent=11 // pred_region
          _
        $region60: #{tpu_custom_call.1} parent=11 // pred_fallthru
          _
        // Predicated region
        $region61: #{tpu_custom_call.1} parent=11 // pred_check
          %p553 = pneg %p329
        $region62: #{tpu_custom_call.1} parent=11 // pred_check_branch
          %555 = sbr.rel (%p553) target = $region64
        $region63: #{tpu_custom_call.1} parent=11 // pred_region
          _
        $region64: #{tpu_custom_call.1} parent=11 // pred_fallthru
          _
        // Predicated region
        $region65: #{tpu_custom_call.1} parent=11 // pred_check
          %p556 = pneg %p350
        $region66: #{tpu_custom_call.1} parent=11 // pred_check_branch
          %558 = sbr.rel (%p556) target = $region68
        $region67: #{tpu_custom_call.1} parent=11 // pred_region
          _
        $region68: #{tpu_custom_call.1} parent=11 // pred_fallthru
          _
        // Predicated region
        $region69: #{tpu_custom_call.1} parent=11 // pred_check
          %p559 = pneg %p371
        $region70: #{tpu_custom_call.1} parent=11 // pred_check_branch
          %561 = sbr.rel (%p559) target = $region72
        $region71: #{tpu_custom_call.1} parent=11 // pred_region
          _
        $region72: #{tpu_custom_call.1} parent=11 // pred_fallthru
          _
        // Predicated region
        $region73: #{tpu_custom_call.1} parent=11 // pred_check
          %p562 = pneg %p392
        $region74: #{tpu_custom_call.1} parent=11 // pred_check_branch
          %564 = sbr.rel (%p562) target = $region76
        $region75: #{tpu_custom_call.1} parent=11 // pred_region
          _
        $region76: #{tpu_custom_call.1} parent=11 // pred_fallthru
          _
        // Predicated region
        $region77: #{tpu_custom_call.1} parent=11 // pred_check
          %p565 = pneg %p413
        $region78: #{tpu_custom_call.1} parent=11 // pred_check_branch
          %567 = sbr.rel (%p565) target = $region80
        $region79: #{tpu_custom_call.1} parent=11 // pred_region
          _
        $region80: #{tpu_custom_call.1} parent=11 // pred_fallthru
          _
        // Predicated region
        $region81: #{tpu_custom_call.1} parent=11 // pred_check
          %p568 = pneg %p434
        $region82: #{tpu_custom_call.1} parent=11 // pred_check_branch
          %570 = sbr.rel (%p568) target = $region84
        $region83: #{tpu_custom_call.1} parent=11 // pred_region
          _
        $region84: #{tpu_custom_call.1} parent=11 // pred_fallthru
          _
        // Predicated region
        $region85: #{tpu_custom_call.1} parent=11 // pred_check
          %p571 = pneg %p455
        $region86: #{tpu_custom_call.1} parent=11 // pred_check_branch
          %573 = sbr.rel (%p571) target = $region88
        $region87: #{tpu_custom_call.1} parent=11 // pred_region
          _
        $region88: #{tpu_custom_call.1} parent=11 // pred_fallthru
          _
        // Predicated region
        $region89: #{tpu_custom_call.1} parent=11 // pred_check
          %p574 = pneg %p476
        $region90: #{tpu_custom_call.1} parent=11 // pred_check_branch
          %576 = sbr.rel (%p574) target = $region92
        $region91: #{tpu_custom_call.1} parent=11 // pred_region
          _
        $region92: #{tpu_custom_call.1} parent=11 // pred_fallthru
          _
      $region12: #{tpu_custom_call.1} parent=5 // pred_fallthru
        _
      %p577 = scmp.lt.s32.totalorder %s30, 2
      // Predicated region
      $region93: #{tpu_custom_call.1} parent=5 // pred_check
        %p578 = pneg %p577
      $region94: #{tpu_custom_call.1} parent=5 // pred_check_branch
        %580 = sbr.rel (%p578) target = $region96
      $region95: #{tpu_custom_call.1} parent=5 // pred_region
        // Predicated region
        $region97: #{tpu_custom_call.1} parent=95 // pred_check
          %p581 = pneg %p50
        $region98: #{tpu_custom_call.1} parent=95 // pred_check_branch
          %583 = sbr.rel (%p581) target = $region100
        $region99: #{tpu_custom_call.1} parent=95 // pred_region
          %p584 = scmp.lt.s32.totalorder %s30, 1
          %s585 = scalar_select %p584, %s30, 1
          %s586 = smul.addr %s585, 2
          %s587 = smul.addr %s586, 8
          %s588 = scalar_lea.vmem %s0, %s587
        $region100: #{tpu_custom_call.1} parent=95 // pred_fallthru
          _
      $region96: #{tpu_custom_call.1} parent=5 // pred_fallthru
        _
      %p589 = scmp.le.s32.totalorder 1, %s30
      %p590 = scmp.lt.s32.totalorder %s30, 3
      %p591 = pnand %p589, %p590
      %p592 = pneg %p591
      // Predicated region
      $region101: #{tpu_custom_call.1} parent=5 // pred_check
        _
      $region102: #{tpu_custom_call.1} parent=5 // pred_check_branch
        %594 = sbr.rel (%p591) target = $region104
      $region103: #{tpu_custom_call.1} parent=5 // pred_region
        %s595 = ssub.s32 %s30, 1
        %p596 = scmp.lt.s32.totalorder %s35, 1
        %s597 = scalar_select %p596, %s35, 1
        %s598 = smul.addr %s597, 2
        %s599 = smul.addr %s598, 8
        %s600 = scalar_lea.vmem %s0, %s599
        %p601 = pneg %p56
        %p602 = pneg %p53
        %p603 = pneg %p77
        %p604 = pneg %p74
        %p605 = pneg %p98
        %p606 = pneg %p95
        %p607 = pneg %p119
        %p608 = pneg %p116
        %p609 = pneg %p140
        %p610 = pneg %p137
        %p611 = pneg %p161
        %p612 = pneg %p158
        %p613 = pneg %p182
        %p614 = pneg %p179
        %p615 = pneg %p203
        %p616 = pneg %p200
        %p617 = pneg %p224
        %p618 = pneg %p221
        %p619 = pneg %p245
        %p620 = pneg %p242
        %p621 = pneg %p266
        %p622 = pneg %p263
        %p623 = pneg %p287
        %p624 = pneg %p284
        %p625 = pneg %p308
        %p626 = pneg %p305
        %p627 = pneg %p329
        %p628 = pneg %p326
        %p629 = pneg %p350
        %p630 = pneg %p347
        %p631 = pneg %p371
        %p632 = pneg %p368
        %p633 = pneg %p392
        %p634 = pneg %p389
        %p635 = pneg %p413
        %p636 = pneg %p410
        %p637 = pneg %p434
        %p638 = pneg %p431
        %p639 = pneg %p455
        %p640 = pneg %p452
        %p641 = pneg %p476
        %p642 = pneg %p473
        %p643 = pneg %p502
        %p644 = pneg %p499
        %s645 = sand.u32 %s489, 1
        %s646 = scalar_lea.sflag [#allocation4], %s645
        %s647 = sand.u32 %s489, 1
        %s648 = smul.addr %s647, 16
        %s649 = scalar_lea.vmem [#allocation3], %s648
        %p650 = scmp.lt.s32.totalorder %s35, 1
        %s651 = scalar_select %p650, %s35, 1
        %s652 = smul.addr %s651, 2
        %s653 = smul.addr %s652, 8
        %s654 = scalar_lea.vmem %s0, %s653
        %v656 = vld [vmem:[%s654] sm:$0xff]
        %v657 = vld [vmem:[%s654 + $0x8] sm:$0xff]
        %v658 = vpack.c.bf16 %v657, %v656
        %v659 = vld [vmem:[%s2] sm:$0xf]
        %v660 = vld [vmem:[%s3] sm:$0x1]
        %v662 = vlaneseq
        %v663 = vshrl.u32 %v662, 7
        %v664 = vsub.s32 0, %v663
        %v665 = vrot.slane %v660, %v664
        %vm667 = vcmask 64512
        %v669 = vsel %vm667, %v658, 0
        %vm671 = vcmask 1043456
        %v673 = vsel %vm671, %v659, 0
        %675 = vmatprep.subr.bf16.mxu0 0
        %676 = vmatpush1.bf16.msra.mxu0 %v673
        %677 = vmatprep.subr.bf16.mxu0 0
        %678 = vmatpush1.bf16.msra.mxu0 0
        %679 = vmatprep.subr.bf16.mxu0 0
        %680 = vmatpush1.bf16.msra.mxu0 0
        %681 = vmatprep.subr.bf16.mxu0 0
        %682 = vmatpush1.bf16.msra.mxu0 0
        %683 = vmatprep.subr.bf16.mxu0 0
        %684 = vmatpush1.bf16.msra.mxu0 0
        %685 = vmatprep.subr.bf16.mxu0 0
        %686 = vmatpush1.bf16.msra.mxu0 0
        %687 = vmatprep.subr.bf16.mxu0 0
        %688 = vmatpush1.bf16.msra.mxu0 0
        %689 = vmatprep.subr.bf16.mxu0 0
        %690 = vmatpush1.bf16.msra.mxu0 0
        %691 = vmatprep.subr.bf16.mxu0 0
        %692 = vmatpush1.bf16.msra.mxu0 0
        %693 = vmatprep.subr.bf16.mxu0 0
        %694 = vmatpush1.bf16.msra.mxu0 0
        %695 = vmatprep.subr.bf16.mxu0 0
        %696 = vmatpush1.bf16.msra.mxu0 0
        %697 = vmatprep.subr.bf16.mxu0 0
        %698 = vmatpush1.bf16.msra.mxu0 0
        %699 = vmatprep.subr.bf16.mxu0 0
        %700 = vmatpush1.bf16.msra.mxu0 0
        %701 = vmatprep.subr.bf16.mxu0 0
        %702 = vmatpush1.bf16.msra.mxu0 0
        %703 = vmatprep.subr.bf16.mxu0 0
        %704 = vmatpush1.bf16.msra.mxu0 0
        %705 = vmatprep.subr.bf16.mxu0 0
        %706 = vmatpush1.bf16.msra.mxu0 0
        %707 = vmatprep.mubr.bf16.mxu0 0
        %708 = vmatmul.mubr.bf16.gmra.mrb[0].mxu0 %v669
        %v709 = vpop.f32.mrb[0].mxu0
        %v710 = vadd.f32 %v665, %v709
        %v711 = vpop.f32.mrb[0].mxu0
        %v712 = vpop.f32.mrb[0].mxu0
        %v713 = vadd.f32 %v665, %v712
        %v714 = vpop.f32.mrb[0].mxu0
        %715 = vdwg.mxu0
        %v716 = vld [vmem:[%s4] sm:$0xff]
        %v717 = vld [vmem:[%s4 + $0x8] sm:$0xff]
        %v718 = vadd.f32 %v710, %v716
        %v719 = vadd.f32 %v713, %v717
        %vm720 = vcmask 261120
        %721 = vst.msk [vmem:[#allocation2] sm:$0xff] %vm720, %v718
        %722 = vst.msk [vmem:[#allocation2 + $0x8] sm:$0xff] %vm720, %v719
        %v723 = vld [vmem:[%s1] sm:$0xff]
        %v724 = vld [vmem:[%s1 + $0x8] sm:$0xff]
        loop: start=0, step=1, limit=2
        $region105: #{tpu_custom_call.1} parent=103 // loop_pre_header
          _
        $region106: #{tpu_custom_call.1} parent=103 // loop_header
          %s726 = sphi 0, %s730
          %p727 = scmp.ge.s32.totalorder %s726, 2
        $region107: #{tpu_custom_call.1} parent=103 // loop_header_branch
          %729 = sbr.rel (%p727) target = $region111
        $region108: #{tpu_custom_call.1} parent=103 // loop_body
          %v731 = vld [vmem:[#allocation2] sm:$0xff]
          %v732 = vld [vmem:[#allocation2 + $0x8] sm:$0xff]
          %s733 = scalar_lea.vmem %s5, %s726
          %v734 = vld [vmem:[%s733] sm:$0x1]
          %s735 = scalar_lea.vmem %s6, %s726
          %v736 = vld [vmem:[%s735] sm:$0x1]
          %v737 = vsel %vm720, %v731, 0.0
          %738 = vadd.xlane.f32.xlu0 %v737
          %v739 = vpop.xlane.xlu0 %738
          %v740 = vsel %vm720, %v732, 0.0
          %741 = vadd.xlane.f32.xlu0 %v740
          %v742 = vpop.xlane.xlu0 %741
          %v743 = vrcp.pop 32.0
          %v744 = vmul.f32 %v739, %v743
          %v745 = vmul.f32 %v742, %v743
          %v746 = vsub.f32 %v731, %v744
          %v747 = vsub.f32 %v732, %v745
          %v748 = vmul.f32 %v746, %v746
          %v749 = vmul.f32 %v747, %v747
          %v750 = vsel %vm720, %v748, 0.0
          %751 = vadd.xlane.f32.xlu0 %v750
          %v752 = vpop.xlane.xlu0 %751
          %v753 = vsel %vm720, %v749, 0.0
          %754 = vadd.xlane.f32.xlu0 %v753
          %v755 = vpop.xlane.xlu0 %754
          %v756 = vmul.f32 %v752, %v743
          %v757 = vmul.f32 %v755, %v743
          %v758 = vadd.f32 %v756, 1e-05
          %v759 = vadd.f32 %v757, 1e-05
          %v760 = vrsqrt.pop %v758
          %v761 = vrsqrt.pop %v759
          %v762 = vmul.f32 %v746, %v760
          %v763 = vmul.f32 %v747, %v761
          %v765 = vlaneseq
          %v766 = vshrl.u32 %v765, 7
          %v767 = vsub.s32 0, %v766
          %v768 = vrot.slane %v734, %v767
          %v770 = vmul.f32 %v762, %v768
          %v771 = vmul.f32 %v763, %v768
          %v773 = vlaneseq
          %v774 = vshrl.u32 %v773, 7
          %v775 = vsub.s32 0, %v774
          %v776 = vrot.slane %v736, %v775
          %v778 = vadd.f32 %v770, %v776
          %v779 = vadd.f32 %v771, %v776
          %v780 = vpack.c.bf16 %v779, %v778
          %s781 = smul.u32 %s726, 4
          %s782 = smul.addr %s781, 4
          %s783 = scalar_lea.vmem %s7, %s782
          %v784 = vld [vmem:[%s783] sm:$0xf]
          %v785 = vld [vmem:[%s783 + $0x4] sm:$0xf]
          %v786 = vld [vmem:[%s783 + $0x8] sm:$0xf]
          %v787 = vld [vmem:[%s783 + $0xc] sm:$0xf]
          %s788 = scalar_lea.vmem %s8, %s726
          %v789 = vld [vmem:[%s788] sm:$0x1]
          %v791 = vlaneseq
          %v792 = vshrl.u32 %v791, 7
          %v793 = vsub.s32 0, %v792
          %v794 = vrot.slane %v789, %v793
          %v800 = vunpack.c.l.b16 %v784
          %v801 = vunpack.c.l.b16 %v785
          %v802 = vunpack.c.l.b16 %v786
          %v803 = vunpack.c.l.b16 %v787
          %v804 = vpack.c.b16 %v801, %v800
          %v805 = vpack.c.b16 %v803, %v802
          %v809 = vsel %vm720, %v780, 0
          %811 = vmatprep.subr.bf16.mxu0 0
          %812 = vmatpush1.bf16.msra.mxu0 %v804
          %813 = vmatprep.subr.bf16.mxu0 0
          %814 = vmatpush1.bf16.msra.mxu0 %v805
          %815 = vmatprep.subr.bf16.mxu0 0
          %816 = vmatpush1.bf16.msra.mxu0 0
          %817 = vmatprep.subr.bf16.mxu0 0
          %818 = vmatpush1.bf16.msra.mxu0 0
          %819 = vmatprep.subr.bf16.mxu0 0
          %820 = vmatpush1.bf16.msra.mxu0 0
          %821 = vmatprep.subr.bf16.mxu0 0
          %822 = vmatpush1.bf16.msra.mxu0 0
          %823 = vmatprep.subr.bf16.mxu0 0
          %824 = vmatpush1.bf16.msra.mxu0 0
          %825 = vmatprep.subr.bf16.mxu0 0
          %826 = vmatpush1.bf16.msra.mxu0 0
          %827 = vmatprep.subr.bf16.mxu0 0
          %828 = vmatpush1.bf16.msra.mxu0 0
          %829 = vmatprep.subr.bf16.mxu0 0
          %830 = vmatpush1.bf16.msra.mxu0 0
          %831 = vmatprep.subr.bf16.mxu0 0
          %832 = vmatpush1.bf16.msra.mxu0 0
          %833 = vmatprep.subr.bf16.mxu0 0
          %834 = vmatpush1.bf16.msra.mxu0 0
          %835 = vmatprep.subr.bf16.mxu0 0
          %836 = vmatpush1.bf16.msra.mxu0 0
          %837 = vmatprep.subr.bf16.mxu0 0
          %838 = vmatpush1.bf16.msra.mxu0 0
          %839 = vmatprep.subr.bf16.mxu0 0
          %840 = vmatpush1.bf16.msra.mxu0 0
          %841 = vmatprep.subr.bf16.mxu0 0
          %842 = vmatpush1.bf16.msra.mxu0 0
          %843 = vmatprep.mubr.bf16.mxu0 0
          %844 = vmatmul.mubr.bf16.gmra.mrb[0].mxu0 %v809
          %v845 = vpop.f32.mrb[0].mxu0
          %v846 = vadd.f32 %v794, %v845
          %v847 = vpop.f32.mrb[0].mxu0
          %v848 = vpop.f32.mrb[0].mxu0
          %v849 = vadd.f32 %v794, %v848
          %v850 = vpop.f32.mrb[0].mxu0
          %851 = vdwg.mxu0
          %852 = vxpose.xlu0.b32.start [1/16] %v846, 128
          %853 = vxpose.xlu0.b32.cont [2/16] %v849, 128
          %854 = vxpose.xlu0.b32.cont [3/16] 0.0, 128
          %855 = vxpose.xlu0.b32.cont [4/16] 0.0, 128
          %856 = vxpose.xlu0.b32.cont [5/16] 0.0, 128
          %857 = vxpose.xlu0.b32.cont [6/16] 0.0, 128
          %858 = vxpose.xlu0.b32.cont [7/16] 0.0, 128
          %859 = vxpose.xlu0.b32.cont [8/16] 0.0, 128
          %860 = vxpose.xlu0.b32.cont [9/16] 0.0, 128
          %861 = vxpose.xlu0.b32.cont [10/16] 0.0, 128
          %862 = vxpose.xlu0.b32.cont [11/16] 0.0, 128
          %863 = vxpose.xlu0.b32.cont [12/16] 0.0, 128
          %864 = vxpose.xlu0.b32.cont [13/16] 0.0, 128
          %865 = vxpose.xlu0.b32.cont [14/16] 0.0, 128
          %866 = vxpose.xlu0.b32.cont [15/16] 0.0, 128
          %867 = vxpose.xlu0.b32.end [16/16] 0.0, 128
          %v868 = vpop.trf.xlu0
          %v869 = vpop.trf.xlu0
          %v870 = vpop.trf.xlu0
          %v871 = vpop.trf.xlu0
          %v872 = vpop.trf.xlu0
          %v873 = vpop.trf.xlu0
          %v874 = vpop.trf.xlu0
          %v875 = vpop.trf.xlu0
          %v876 = vpop.trf.xlu0
          %v877 = vpop.trf.xlu0
          %v878 = vpop.trf.xlu0
          %v879 = vpop.trf.xlu0
          %v880 = vpop.trf.xlu0
          %v881 = vpop.trf.xlu0
          %v882 = vpop.trf.xlu0
          %v883 = vpop.trf.xlu0
          %884 = vxpose.xlu0.b32.start [1/16] %v868, 128
          %885 = vxpose.xlu0.b32.cont [2/16] 0.0, 128
          %886 = vxpose.xlu0.b32.cont [3/16] 0.0, 128
          %887 = vxpose.xlu0.b32.cont [4/16] 0.0, 128
          %888 = vxpose.xlu0.b32.cont [5/16] 0.0, 128
          %889 = vxpose.xlu0.b32.cont [6/16] 0.0, 128
          %890 = vxpose.xlu0.b32.cont [7/16] 0.0, 128
          %891 = vxpose.xlu0.b32.cont [8/16] 0.0, 128
          %892 = vxpose.xlu0.b32.cont [9/16] 0.0, 128
          %893 = vxpose.xlu0.b32.cont [10/16] 0.0, 128
          %894 = vxpose.xlu0.b32.cont [11/16] 0.0, 128
          %895 = vxpose.xlu0.b32.cont [12/16] 0.0, 128
          %896 = vxpose.xlu0.b32.cont [13/16] 0.0, 128
          %897 = vxpose.xlu0.b32.cont [14/16] 0.0, 128
          %898 = vxpose.xlu0.b32.cont [15/16] 0.0, 128
          %899 = vxpose.xlu0.b32.end [16/16] 0.0, 128
          %v900 = vpop.trf.xlu0
          %v901 = vpop.trf.xlu0
          %v902 = vpop.trf.xlu0
          %v903 = vpop.trf.xlu0
          %v904 = vpop.trf.xlu0
          %v905 = vpop.trf.xlu0
          %v906 = vpop.trf.xlu0
          %v907 = vpop.trf.xlu0
          %v908 = vpop.trf.xlu0
          %v909 = vpop.trf.xlu0
          %v910 = vpop.trf.xlu0
          %v911 = vpop.trf.xlu0
          %v912 = vpop.trf.xlu0
          %v913 = vpop.trf.xlu0
          %v914 = vpop.trf.xlu0
          %v915 = vpop.trf.xlu0
          %916 = vxpose.xlu0.b32.start [1/16] %v869, 128
          %917 = vxpose.xlu0.b32.cont [2/16] 0.0, 128
          %918 = vxpose.xlu0.b32.cont [3/16] 0.0, 128
          %919 = vxpose.xlu0.b32.cont [4/16] 0.0, 128
          %920 = vxpose.xlu0.b32.cont [5/16] 0.0, 128
          %921 = vxpose.xlu0.b32.cont [6/16] 0.0, 128
          %922 = vxpose.xlu0.b32.cont [7/16] 0.0, 128
          %923 = vxpose.xlu0.b32.cont [8/16] 0.0, 128
          %924 = vxpose.xlu0.b32.cont [9/16] 0.0, 128
          %925 = vxpose.xlu0.b32.cont [10/16] 0.0, 128
          %926 = vxpose.xlu0.b32.cont [11/16] 0.0, 128
          %927 = vxpose.xlu0.b32.cont [12/16] 0.0, 128
          %928 = vxpose.xlu0.b32.cont [13/16] 0.0, 128
          %929 = vxpose.xlu0.b32.cont [14/16] 0.0, 128
          %930 = vxpose.xlu0.b32.cont [15/16] 0.0, 128
          %931 = vxpose.xlu0.b32.end [16/16] 0.0, 128
          %v932 = vpop.trf.xlu0
          %v933 = vpop.trf.xlu0
          %v934 = vpop.trf.xlu0
          %v935 = vpop.trf.xlu0
          %v936 = vpop.trf.xlu0
          %v937 = vpop.trf.xlu0
          %v938 = vpop.trf.xlu0
          %v939 = vpop.trf.xlu0
          %v940 = vpop.trf.xlu0
          %v941 = vpop.trf.xlu0
          %v942 = vpop.trf.xlu0
          %v943 = vpop.trf.xlu0
          %v944 = vpop.trf.xlu0
          %v945 = vpop.trf.xlu0
          %v946 = vpop.trf.xlu0
          %v947 = vpop.trf.xlu0
          %948 = vxpose.xlu0.b32.start [1/16] %v870, 128
          %949 = vxpose.xlu0.b32.cont [2/16] 0.0, 128
          %950 = vxpose.xlu0.b32.cont [3/16] 0.0, 128
          %951 = vxpose.xlu0.b32.cont [4/16] 0.0, 128
          %952 = vxpose.xlu0.b32.cont [5/16] 0.0, 128
          %953 = vxpose.xlu0.b32.cont [6/16] 0.0, 128
          %954 = vxpose.xlu0.b32.cont [7/16] 0.0, 128
          %955 = vxpose.xlu0.b32.cont [8/16] 0.0, 128
          %956 = vxpose.xlu0.b32.cont [9/16] 0.0, 128
          %957 = vxpose.xlu0.b32.cont [10/16] 0.0, 128
          %958 = vxpose.xlu0.b32.cont [11/16] 0.0, 128
          %959 = vxpose.xlu0.b32.cont [12/16] 0.0, 128
          %960 = vxpose.xlu0.b32.cont [13/16] 0.0, 128
          %961 = vxpose.xlu0.b32.cont [14/16] 0.0, 128
          %962 = vxpose.xlu0.b32.cont [15/16] 0.0, 128
          %963 = vxpose.xlu0.b32.end [16/16] 0.0, 128
          %v964 = vpop.trf.xlu0
          %v965 = vpop.trf.xlu0
          %v966 = vpop.trf.xlu0
          %v967 = vpop.trf.xlu0
          %v968 = vpop.trf.xlu0
          %v969 = vpop.trf.xlu0
          %v970 = vpop.trf.xlu0
          %v971 = vpop.trf.xlu0
          %v972 = vpop.trf.xlu0
          %v973 = vpop.trf.xlu0
          %v974 = vpop.trf.xlu0
          %v975 = vpop.trf.xlu0
          %v976 = vpop.trf.xlu0
          %v977 = vpop.trf.xlu0
          %v978 = vpop.trf.xlu0
          %v979 = vpop.trf.xlu0
          %980 = vxpose.xlu0.b32.start [1/16] %v871, 128
          %981 = vxpose.xlu0.b32.cont [2/16] 0.0, 128
          %982 = vxpose.xlu0.b32.cont [3/16] 0.0, 128
          %983 = vxpose.xlu0.b32.cont [4/16] 0.0, 128
          %984 = vxpose.xlu0.b32.cont [5/16] 0.0, 128
          %985 = vxpose.xlu0.b32.cont [6/16] 0.0, 128
          %986 = vxpose.xlu0.b32.cont [7/16] 0.0, 128
          %987 = vxpose.xlu0.b32.cont [8/16] 0.0, 128
          %988 = vxpose.xlu0.b32.cont [9/16] 0.0, 128
          %989 = vxpose.xlu0.b32.cont [10/16] 0.0, 128
          %990 = vxpose.xlu0.b32.cont [11/16] 0.0, 128
          %991 = vxpose.xlu0.b32.cont [12/16] 0.0, 128
          %992 = vxpose.xlu0.b32.cont [13/16] 0.0, 128
          %993 = vxpose.xlu0.b32.cont [14/16] 0.0, 128
          %994 = vxpose.xlu0.b32.cont [15/16] 0.0, 128
          %995 = vxpose.xlu0.b32.end [16/16] 0.0, 128
          %v996 = vpop.trf.xlu0
          %v997 = vpop.trf.xlu0
          %v998 = vpop.trf.xlu0
          %v999 = vpop.trf.xlu0
          %v1000 = vpop.trf.xlu0
          %v1001 = vpop.trf.xlu0
          %v1002 = vpop.trf.xlu0
          %v1003 = vpop.trf.xlu0
          %v1004 = vpop.trf.xlu0
          %v1005 = vpop.trf.xlu0
          %v1006 = vpop.trf.xlu0
          %v1007 = vpop.trf.xlu0
          %v1008 = vpop.trf.xlu0
          %v1009 = vpop.trf.xlu0
          %v1010 = vpop.trf.xlu0
          %v1011 = vpop.trf.xlu0
          %v1012 = vmul.f32 %v900, 0.35355338
          %v1013 = vmul.f32 %v901, 0.35355338
          %v1014 = vmul.f32 %v932, 0.35355338
          %v1015 = vmul.f32 %v933, 0.35355338
          %v1016 = vmul.f32 %v964, 0.35355338
          %v1017 = vmul.f32 %v965, 0.35355338
          %v1018 = vmul.f32 %v996, 0.35355338
          %v1019 = vmul.f32 %v997, 0.35355338
          %v1020 = vpack.c.bf16 %v1013, %v1012
          %v1021 = vpack.c.bf16 %v1015, %v1014
          %v1022 = vpack.c.bf16 %v1017, %v1016
          %v1023 = vpack.c.bf16 %v1019, %v1018
          %v1024 = vpack.c.bf16 %v872, %v872
          %v1025 = vpack.c.bf16 %v873, %v873
          %v1026 = vpack.c.bf16 %v874, %v874
          %v1027 = vpack.c.bf16 %v875, %v875
          %1028 = vxpose.xlu0.b32.start [1/16] %v876, 128
          %1029 = vxpose.xlu0.b32.cont [2/16] 0.0, 128
          %1030 = vxpose.xlu0.b32.cont [3/16] 0.0, 128
          %1031 = vxpose.xlu0.b32.cont [4/16] 0.0, 128
          %1032 = vxpose.xlu0.b32.cont [5/16] 0.0, 128
          %1033 = vxpose.xlu0.b32.cont [6/16] 0.0, 128
          %1034 = vxpose.xlu0.b32.cont [7/16] 0.0, 128
          %1035 = vxpose.xlu0.b32.cont [8/16] 0.0, 128
          %1036 = vxpose.xlu0.b32.cont [9/16] 0.0, 128
          %1037 = vxpose.xlu0.b32.cont [10/16] 0.0, 128
          %1038 = vxpose.xlu0.b32.cont [11/16] 0.0, 128
          %1039 = vxpose.xlu0.b32.cont [12/16] 0.0, 128
          %1040 = vxpose.xlu0.b32.cont [13/16] 0.0, 128
          %1041 = vxpose.xlu0.b32.cont [14/16] 0.0, 128
          %1042 = vxpose.xlu0.b32.cont [15/16] 0.0, 128
          %1043 = vxpose.xlu0.b32.end [16/16] 0.0, 128
          %v1044 = vpop.trf.xlu0
          %v1045 = vpop.trf.xlu0
          %v1046 = vpop.trf.xlu0
          %v1047 = vpop.trf.xlu0
          %v1048 = vpop.trf.xlu0
          %v1049 = vpop.trf.xlu0
          %v1050 = vpop.trf.xlu0
          %v1051 = vpop.trf.xlu0
          %v1052 = vpop.trf.xlu0
          %v1053 = vpop.trf.xlu0
          %v1054 = vpop.trf.xlu0
          %v1055 = vpop.trf.xlu0
          %v1056 = vpop.trf.xlu0
          %v1057 = vpop.trf.xlu0
          %v1058 = vpop.trf.xlu0
          %v1059 = vpop.trf.xlu0
          %1060 = vxpose.xlu0.b32.start [1/16] %v877, 128
          %1061 = vxpose.xlu0.b32.cont [2/16] 0.0, 128
          %1062 = vxpose.xlu0.b32.cont [3/16] 0.0, 128
          %1063 = vxpose.xlu0.b32.cont [4/16] 0.0, 128
          %1064 = vxpose.xlu0.b32.cont [5/16] 0.0, 128
          %1065 = vxpose.xlu0.b32.cont [6/16] 0.0, 128
          %1066 = vxpose.xlu0.b32.cont [7/16] 0.0, 128
          %1067 = vxpose.xlu0.b32.cont [8/16] 0.0, 128
          %1068 = vxpose.xlu0.b32.cont [9/16] 0.0, 128
          %1069 = vxpose.xlu0.b32.cont [10/16] 0.0, 128
          %1070 = vxpose.xlu0.b32.cont [11/16] 0.0, 128
          %1071 = vxpose.xlu0.b32.cont [12/16] 0.0, 128
          %1072 = vxpose.xlu0.b32.cont [13/16] 0.0, 128
          %1073 = vxpose.xlu0.b32.cont [14/16] 0.0, 128
          %1074 = vxpose.xlu0.b32.cont [15/16] 0.0, 128
          %1075 = vxpose.xlu0.b32.end [16/16] 0.0, 128
          %v1076 = vpop.trf.xlu0
          %v1077 = vpop.trf.xlu0
          %v1078 = vpop.trf.xlu0
          %v1079 = vpop.trf.xlu0
          %v1080 = vpop.trf.xlu0
          %v1081 = vpop.trf.xlu0
          %v1082 = vpop.trf.xlu0
          %v1083 = vpop.trf.xlu0
          %v1084 = vpop.trf.xlu0
          %v1085 = vpop.trf.xlu0
          %v1086 = vpop.trf.xlu0
          %v1087 = vpop.trf.xlu0
          %v1088 = vpop.trf.xlu0
          %v1089 = vpop.trf.xlu0
          %v1090 = vpop.trf.xlu0
          %v1091 = vpop.trf.xlu0
          %1092 = vxpose.xlu0.b32.start [1/16] %v878, 128
          %1093 = vxpose.xlu0.b32.cont [2/16] 0.0, 128
          %1094 = vxpose.xlu0.b32.cont [3/16] 0.0, 128
          %1095 = vxpose.xlu0.b32.cont [4/16] 0.0, 128
          %1096 = vxpose.xlu0.b32.cont [5/16] 0.0, 128
          %1097 = vxpose.xlu0.b32.cont [6/16] 0.0, 128
          %1098 = vxpose.xlu0.b32.cont [7/16] 0.0, 128
          %1099 = vxpose.xlu0.b32.cont [8/16] 0.0, 128
          %1100 = vxpose.xlu0.b32.cont [9/16] 0.0, 128
          %1101 = vxpose.xlu0.b32.cont [10/16] 0.0, 128
          %1102 = vxpose.xlu0.b32.cont [11/16] 0.0, 128
          %1103 = vxpose.xlu0.b32.cont [12/16] 0.0, 128
          %1104 = vxpose.xlu0.b32.cont [13/16] 0.0, 128
          %1105 = vxpose.xlu0.b32.cont [14/16] 0.0, 128
          %1106 = vxpose.xlu0.b32.cont [15/16] 0.0, 128
          %1107 = vxpose.xlu0.b32.end [16/16] 0.0, 128
          %v1108 = vpop.trf.xlu0
          %v1109 = vpop.trf.xlu0
          %v1110 = vpop.trf.xlu0
          %v1111 = vpop.trf.xlu0
          %v1112 = vpop.trf.xlu0
          %v1113 = vpop.trf.xlu0
          %v1114 = vpop.trf.xlu0
          %v1115 = vpop.trf.xlu0
          %v1116 = vpop.trf.xlu0
          %v1117 = vpop.trf.xlu0
          %v1118 = vpop.trf.xlu0
          %v1119 = vpop.trf.xlu0
          %v1120 = vpop.trf.xlu0
          %v1121 = vpop.trf.xlu0
          %v1122 = vpop.trf.xlu0
          %v1123 = vpop.trf.xlu0
          %1124 = vxpose.xlu0.b32.start [1/16] %v879, 128
          %1125 = vxpose.xlu0.b32.cont [2/16] 0.0, 128
          %1126 = vxpose.xlu0.b32.cont [3/16] 0.0, 128
          %1127 = vxpose.xlu0.b32.cont [4/16] 0.0, 128
          %1128 = vxpose.xlu0.b32.cont [5/16] 0.0, 128
          %1129 = vxpose.xlu0.b32.cont [6/16] 0.0, 128
          %1130 = vxpose.xlu0.b32.cont [7/16] 0.0, 128
          %1131 = vxpose.xlu0.b32.cont [8/16] 0.0, 128
          %1132 = vxpose.xlu0.b32.cont [9/16] 0.0, 128
          %1133 = vxpose.xlu0.b32.cont [10/16] 0.0, 128
          %1134 = vxpose.xlu0.b32.cont [11/16] 0.0, 128
          %1135 = vxpose.xlu0.b32.cont [12/16] 0.0, 128
          %1136 = vxpose.xlu0.b32.cont [13/16] 0.0, 128
          %1137 = vxpose.xlu0.b32.cont [14/16] 0.0, 128
          %1138 = vxpose.xlu0.b32.cont [15/16] 0.0, 128
          %1139 = vxpose.xlu0.b32.end [16/16] 0.0, 128
          %v1140 = vpop.trf.xlu0
          %v1141 = vpop.trf.xlu0
          %v1142 = vpop.trf.xlu0
          %v1143 = vpop.trf.xlu0
          %v1144 = vpop.trf.xlu0
          %v1145 = vpop.trf.xlu0
          %v1146 = vpop.trf.xlu0
          %v1147 = vpop.trf.xlu0
          %v1148 = vpop.trf.xlu0
          %v1149 = vpop.trf.xlu0
          %v1150 = vpop.trf.xlu0
          %v1151 = vpop.trf.xlu0
          %v1152 = vpop.trf.xlu0
          %v1153 = vpop.trf.xlu0
          %v1154 = vpop.trf.xlu0
          %v1155 = vpop.trf.xlu0
          %v1156 = vpack.c.bf16 %v1045, %v1044
          %v1157 = vpack.c.bf16 %v1077, %v1076
          %v1158 = vpack.c.bf16 %v1109, %v1108
          %v1159 = vpack.c.bf16 %v1141, %v1140
          %v1161 = vsel %vm667, %v1020, 0
          %v1164 = vsel %vm671, %v1024, 0
          %1166 = vmatprep.subr.bf16.mxu0 0
          %1167 = vmatpush1.bf16.msra.mxu0 %v1164
          %1168 = vmatprep.subr.bf16.mxu0 0
          %1169 = vmatpush1.bf16.msra.mxu0 0
          %1170 = vmatprep.subr.bf16.mxu0 0
          %1171 = vmatpush1.bf16.msra.mxu0 0
          %1172 = vmatprep.subr.bf16.mxu0 0
          %1173 = vmatpush1.bf16.msra.mxu0 0
          %1174 = vmatprep.subr.bf16.mxu0 0
          %1175 = vmatpush1.bf16.msra.mxu0 0
          %1176 = vmatprep.subr.bf16.mxu0 0
          %1177 = vmatpush1.bf16.msra.mxu0 0
          %1178 = vmatprep.subr.bf16.mxu0 0
          %1179 = vmatpush1.bf16.msra.mxu0 0
          %1180 = vmatprep.subr.bf16.mxu0 0
          %1181 = vmatpush1.bf16.msra.mxu0 0
          %1182 = vmatprep.subr.bf16.mxu0 0
          %1183 = vmatpush1.bf16.msra.mxu0 0
          %1184 = vmatprep.subr.bf16.mxu0 0
          %1185 = vmatpush1.bf16.msra.mxu0 0
          %1186 = vmatprep.subr.bf16.mxu0 0
          %1187 = vmatpush1.bf16.msra.mxu0 0
          %1188 = vmatprep.subr.bf16.mxu0 0
          %1189 = vmatpush1.bf16.msra.mxu0 0
          %1190 = vmatprep.subr.bf16.mxu0 0
          %1191 = vmatpush1.bf16.msra.mxu0 0
          %1192 = vmatprep.subr.bf16.mxu0 0
          %1193 = vmatpush1.bf16.msra.mxu0 0
          %1194 = vmatprep.subr.bf16.mxu0 0
          %1195 = vmatpush1.bf16.msra.mxu0 0
          %1196 = vmatprep.subr.bf16.mxu0 0
          %1197 = vmatpush1.bf16.msra.mxu0 0
          %1198 = vmatprep.mubr.bf16.mxu0 0
          %1199 = vmatmul.mubr.bf16.gmra.mrb[0].mxu0 %v1161
          %v1200 = vpop.f32.mrb[0].mxu0
          %v1201 = vadd.f32 %v723, %v1200
          %v1202 = vpop.f32.mrb[0].mxu0
          %v1203 = vpop.f32.mrb[0].mxu0
          %v1204 = vadd.f32 %v724, %v1203
          %v1205 = vpop.f32.mrb[0].mxu0
          %1206 = vdwg.mxu0
          %v1208 = vsel %vm667, %v1021, 0
          %v1211 = vsel %vm671, %v1025, 0
          %1213 = vmatprep.subr.bf16.mxu0 0
          %1214 = vmatpush1.bf16.msra.mxu0 %v1211
          %1215 = vmatprep.subr.bf16.mxu0 0
          %1216 = vmatpush1.bf16.msra.mxu0 0
          %1217 = vmatprep.subr.bf16.mxu0 0
          %1218 = vmatpush1.bf16.msra.mxu0 0
          %1219 = vmatprep.subr.bf16.mxu0 0
          %1220 = vmatpush1.bf16.msra.mxu0 0
          %1221 = vmatprep.subr.bf16.mxu0 0
          %1222 = vmatpush1.bf16.msra.mxu0 0
          %1223 = vmatprep.subr.bf16.mxu0 0
          %1224 = vmatpush1.bf16.msra.mxu0 0
          %1225 = vmatprep.subr.bf16.mxu0 0
          %1226 = vmatpush1.bf16.msra.mxu0 0
          %1227 = vmatprep.subr.bf16.mxu0 0
          %1228 = vmatpush1.bf16.msra.mxu0 0
          %1229 = vmatprep.subr.bf16.mxu0 0
          %1230 = vmatpush1.bf16.msra.mxu0 0
          %1231 = vmatprep.subr.bf16.mxu0 0
          %1232 = vmatpush1.bf16.msra.mxu0 0
          %1233 = vmatprep.subr.bf16.mxu0 0
          %1234 = vmatpush1.bf16.msra.mxu0 0
          %1235 = vmatprep.subr.bf16.mxu0 0
          %1236 = vmatpush1.bf16.msra.mxu0 0
          %1237 = vmatprep.subr.bf16.mxu0 0
          %1238 = vmatpush1.bf16.msra.mxu0 0
          %1239 = vmatprep.subr.bf16.mxu0 0
          %1240 = vmatpush1.bf16.msra.mxu0 0
          %1241 = vmatprep.subr.bf16.mxu0 0
          %1242 = vmatpush1.bf16.msra.mxu0 0
          %1243 = vmatprep.subr.bf16.mxu0 0
          %1244 = vmatpush1.bf16.msra.mxu0 0
          %1245 = vmatprep.mubr.bf16.mxu0 0
          %1246 = vmatmul.mubr.bf16.gmra.mrb[0].mxu0 %v1208
          %v1247 = vpop.f32.mrb[0].mxu0
          %v1248 = vadd.f32 %v723, %v1247
          %v1249 = vpop.f32.mrb[0].mxu0
          %v1250 = vpop.f32.mrb[0].mxu0
          %v1251 = vadd.f32 %v724, %v1250
          %v1252 = vpop.f32.mrb[0].mxu0
          %1253 = vdwg.mxu0
          %v1255 = vsel %vm667, %v1022, 0
          %v1258 = vsel %vm671, %v1026, 0
          %1260 = vmatprep.subr.bf16.mxu0 0
          %1261 = vmatpush1.bf16.msra.mxu0 %v1258
          %1262 = vmatprep.subr.bf16.mxu0 0
          %1263 = vmatpush1.bf16.msra.mxu0 0
          %1264 = vmatprep.subr.bf16.mxu0 0
          %1265 = vmatpush1.bf16.msra.mxu0 0
          %1266 = vmatprep.subr.bf16.mxu0 0
          %1267 = vmatpush1.bf16.msra.mxu0 0
          %1268 = vmatprep.subr.bf16.mxu0 0
          %1269 = vmatpush1.bf16.msra.mxu0 0
          %1270 = vmatprep.subr.bf16.mxu0 0
          %1271 = vmatpush1.bf16.msra.mxu0 0
          %1272 = vmatprep.subr.bf16.mxu0 0
          %1273 = vmatpush1.bf16.msra.mxu0 0
          %1274 = vmatprep.subr.bf16.mxu0 0
          %1275 = vmatpush1.bf16.msra.mxu0 0
          %1276 = vmatprep.subr.bf16.mxu0 0
          %1277 = vmatpush1.bf16.msra.mxu0 0
          %1278 = vmatprep.subr.bf16.mxu0 0
          %1279 = vmatpush1.bf16.msra.mxu0 0
          %1280 = vmatprep.subr.bf16.mxu0 0
          %1281 = vmatpush1.bf16.msra.mxu0 0
          %1282 = vmatprep.subr.bf16.mxu0 0
          %1283 = vmatpush1.bf16.msra.mxu0 0
          %1284 = vmatprep.subr.bf16.mxu0 0
          %1285 = vmatpush1.bf16.msra.mxu0 0
          %1286 = vmatprep.subr.bf16.mxu0 0
          %1287 = vmatpush1.bf16.msra.mxu0 0
          %1288 = vmatprep.subr.bf16.mxu0 0
          %1289 = vmatpush1.bf16.msra.mxu0 0
          %1290 = vmatprep.subr.bf16.mxu0 0
          %1291 = vmatpush1.bf16.msra.mxu0 0
          %1292 = vmatprep.mubr.bf16.mxu0 0
          %1293 = vmatmul.mubr.bf16.gmra.mrb[0].mxu0 %v1255
          %v1294 = vpop.f32.mrb[0].mxu0
          %v1295 = vadd.f32 %v723, %v1294
          %v1296 = vpop.f32.mrb[0].mxu0
          %v1297 = vpop.f32.mrb[0].mxu0
          %v1298 = vadd.f32 %v724, %v1297
          %v1299 = vpop.f32.mrb[0].mxu0
          %1300 = vdwg.mxu0
          %v1302 = vsel %vm667, %v1023, 0
          %v1305 = vsel %vm671, %v1027, 0
          %1307 = vmatprep.subr.bf16.mxu0 0
          %1308 = vmatpush1.bf16.msra.mxu0 %v1305
          %1309 = vmatprep.subr.bf16.mxu0 0
          %1310 = vmatpush1.bf16.msra.mxu0 0
          %1311 = vmatprep.subr.bf16.mxu0 0
          %1312 = vmatpush1.bf16.msra.mxu0 0
          %1313 = vmatprep.subr.bf16.mxu0 0
          %1314 = vmatpush1.bf16.msra.mxu0 0
          %1315 = vmatprep.subr.bf16.mxu0 0
          %1316 = vmatpush1.bf16.msra.mxu0 0
          %1317 = vmatprep.subr.bf16.mxu0 0
          %1318 = vmatpush1.bf16.msra.mxu0 0
          %1319 = vmatprep.subr.bf16.mxu0 0
          %1320 = vmatpush1.bf16.msra.mxu0 0
          %1321 = vmatprep.subr.bf16.mxu0 0
          %1322 = vmatpush1.bf16.msra.mxu0 0
          %1323 = vmatprep.subr.bf16.mxu0 0
          %1324 = vmatpush1.bf16.msra.mxu0 0
          %1325 = vmatprep.subr.bf16.mxu0 0
          %1326 = vmatpush1.bf16.msra.mxu0 0
          %1327 = vmatprep.subr.bf16.mxu0 0
          %1328 = vmatpush1.bf16.msra.mxu0 0
          %1329 = vmatprep.subr.bf16.mxu0 0
          %1330 = vmatpush1.bf16.msra.mxu0 0
          %1331 = vmatprep.subr.bf16.mxu0 0
          %1332 = vmatpush1.bf16.msra.mxu0 0
          %1333 = vmatprep.subr.bf16.mxu0 0
          %1334 = vmatpush1.bf16.msra.mxu0 0
          %1335 = vmatprep.subr.bf16.mxu0 0
          %1336 = vmatpush1.bf16.msra.mxu0 0
          %1337 = vmatprep.subr.bf16.mxu0 0
          %1338 = vmatpush1.bf16.msra.mxu0 0
          %1339 = vmatprep.mubr.bf16.mxu0 0
          %1340 = vmatmul.mubr.bf16.gmra.mrb[0].mxu0 %v1302
          %v1341 = vpop.f32.mrb[0].mxu0
          %v1342 = vadd.f32 %v723, %v1341
          %v1343 = vpop.f32.mrb[0].mxu0
          %v1344 = vpop.f32.mrb[0].mxu0
          %v1345 = vadd.f32 %v724, %v1344
          %v1346 = vpop.f32.mrb[0].mxu0
          %1347 = vdwg.mxu0
          %vm1348 = vcmask 130048
          %v1349 = vsel %vm1348, %v1201, -inf
          %1350 = vmax.xlane.f32.xlu0 %v1349
          %v1351 = vpop.xlane.xlu0 %1350
          %v1352 = vsel %vm1348, %v1204, -inf
          %1353 = vmax.xlane.f32.xlu0 %v1352
          %v1354 = vpop.xlane.xlu0 %1353
          %v1355 = vsel %vm1348, %v1248, -inf
          %1356 = vmax.xlane.f32.xlu0 %v1355
          %v1357 = vpop.xlane.xlu0 %1356
          %v1358 = vsel %vm1348, %v1251, -inf
          %1359 = vmax.xlane.f32.xlu0 %v1358
          %v1360 = vpop.xlane.xlu0 %1359
          %v1361 = vsel %vm1348, %v1295, -inf
          %1362 = vmax.xlane.f32.xlu0 %v1361
          %v1363 = vpop.xlane.xlu0 %1362
          %v1364 = vsel %vm1348, %v1298, -inf
          %1365 = vmax.xlane.f32.xlu0 %v1364
          %v1366 = vpop.xlane.xlu0 %1365
          %v1367 = vsel %vm1348, %v1342, -inf
          %1368 = vmax.xlane.f32.xlu0 %v1367
          %v1369 = vpop.xlane.xlu0 %1368
          %v1370 = vsel %vm1348, %v1345, -inf
          %1371 = vmax.xlane.f32.xlu0 %v1370
          %v1372 = vpop.xlane.xlu0 %1371
          %v1373 = vsub.f32 %v1201, %v1351
          %v1374 = vsub.f32 %v1204, %v1354
          %v1375 = vsub.f32 %v1248, %v1357
          %v1376 = vsub.f32 %v1251, %v1360
          %v1377 = vsub.f32 %v1295, %v1363
          %v1378 = vsub.f32 %v1298, %v1366
          %v1379 = vsub.f32 %v1342, %v1369
          %v1380 = vsub.f32 %v1345, %v1372
          %v1381 = vmul.f32 %v1373, 1.442695
          %v1382 = vpow.pop %v1381
          %v1383 = vmul.f32 %v1374, 1.442695
          %v1384 = vpow.pop %v1383
          %v1385 = vmul.f32 %v1375, 1.442695
          %v1386 = vpow.pop %v1385
          %v1387 = vmul.f32 %v1376, 1.442695
          %v1388 = vpow.pop %v1387
          %v1389 = vmul.f32 %v1377, 1.442695
          %v1390 = vpow.pop %v1389
          %v1391 = vmul.f32 %v1378, 1.442695
          %v1392 = vpow.pop %v1391
          %v1393 = vmul.f32 %v1379, 1.442695
          %v1394 = vpow.pop %v1393
          %v1395 = vmul.f32 %v1380, 1.442695
          %v1396 = vpow.pop %v1395
          %v1397 = vsel %vm1348, %v1382, 0.0
          %1398 = vadd.xlane.f32.xlu0 %v1397
          %v1399 = vpop.xlane.xlu0 %1398
          %v1400 = vsel %vm1348, %v1384, 0.0
          %1401 = vadd.xlane.f32.xlu0 %v1400
          %v1402 = vpop.xlane.xlu0 %1401
          %v1403 = vsel %vm1348, %v1386, 0.0
          %1404 = vadd.xlane.f32.xlu0 %v1403
          %v1405 = vpop.xlane.xlu0 %1404
          %v1406 = vsel %vm1348, %v1388, 0.0
          %1407 = vadd.xlane.f32.xlu0 %v1406
          %v1408 = vpop.xlane.xlu0 %1407
          %v1409 = vsel %vm1348, %v1390, 0.0
          %1410 = vadd.xlane.f32.xlu0 %v1409
          %v1411 = vpop.xlane.xlu0 %1410
          %v1412 = vsel %vm1348, %v1392, 0.0
          %1413 = vadd.xlane.f32.xlu0 %v1412
          %v1414 = vpop.xlane.xlu0 %1413
          %v1415 = vsel %vm1348, %v1394, 0.0
          %1416 = vadd.xlane.f32.xlu0 %v1415
          %v1417 = vpop.xlane.xlu0 %1416
          %v1418 = vsel %vm1348, %v1396, 0.0
          %1419 = vadd.xlane.f32.xlu0 %v1418
          %v1420 = vpop.xlane.xlu0 %1419
          %v1421 = vrcp.pop %v1399
          %v1422 = vrcp.pop %v1402
          %v1423 = vrcp.pop %v1405
          %v1424 = vrcp.pop %v1408
          %v1425 = vrcp.pop %v1411
          %v1426 = vrcp.pop %v1414
          %v1427 = vrcp.pop %v1417
          %v1428 = vrcp.pop %v1420
          %v1429 = vpack.c.bf16 %v1384, %v1382
          %v1430 = vpack.c.bf16 %v1388, %v1386
          %v1431 = vpack.c.bf16 %v1392, %v1390
          %v1432 = vpack.c.bf16 %v1396, %v1394
          %v1434 = vsel %vm1348, %v1429, 0
          %1436 = vmatprep.subr.bf16.mxu0 0
          %1437 = vmatpush1.bf16.msra.mxu0 %v1156
          %1438 = vmatprep.subr.bf16.mxu0 0
          %1439 = vmatpush1.bf16.msra.mxu0 0
          %1440 = vmatprep.subr.bf16.mxu0 0
          %1441 = vmatpush1.bf16.msra.mxu0 0
          %1442 = vmatprep.subr.bf16.mxu0 0
          %1443 = vmatpush1.bf16.msra.mxu0 0
          %1444 = vmatprep.subr.bf16.mxu0 0
          %1445 = vmatpush1.bf16.msra.mxu0 0
          %1446 = vmatprep.subr.bf16.mxu0 0
          %1447 = vmatpush1.bf16.msra.mxu0 0
          %1448 = vmatprep.subr.bf16.mxu0 0
          %1449 = vmatpush1.bf16.msra.mxu0 0
          %1450 = vmatprep.subr.bf16.mxu0 0
          %1451 = vmatpush1.bf16.msra.mxu0 0
          %1452 = vmatprep.subr.bf16.mxu0 0
          %1453 = vmatpush1.bf16.msra.mxu0 0
          %1454 = vmatprep.subr.bf16.mxu0 0
          %1455 = vmatpush1.bf16.msra.mxu0 0
          %1456 = vmatprep.subr.bf16.mxu0 0
          %1457 = vmatpush1.bf16.msra.mxu0 0
          %1458 = vmatprep.subr.bf16.mxu0 0
          %1459 = vmatpush1.bf16.msra.mxu0 0
          %1460 = vmatprep.subr.bf16.mxu0 0
          %1461 = vmatpush1.bf16.msra.mxu0 0
          %1462 = vmatprep.subr.bf16.mxu0 0
          %1463 = vmatpush1.bf16.msra.mxu0 0
          %1464 = vmatprep.subr.bf16.mxu0 0
          %1465 = vmatpush1.bf16.msra.mxu0 0
          %1466 = vmatprep.subr.bf16.mxu0 0
          %1467 = vmatpush1.bf16.msra.mxu0 0
          %1468 = vmatprep.mubr.bf16.mxu0 0
          %1469 = vmatmul.mubr.bf16.gmra.mrb[0].mxu0 %v1434
          %v1470 = vpop.f32.mrb[0].mxu0
          %v1471 = vadd.f32 0.0, %v1470
          %v1472 = vpop.f32.mrb[0].mxu0
          %v1473 = vpop.f32.mrb[0].mxu0
          %v1474 = vadd.f32 0.0, %v1473
          %v1475 = vpop.f32.mrb[0].mxu0
          %1476 = vdwg.mxu0
          %v1478 = vsel %vm1348, %v1430, 0
          %1480 = vmatprep.subr.bf16.mxu0 0
          %1481 = vmatpush1.bf16.msra.mxu0 %v1157
          %1482 = vmatprep.subr.bf16.mxu0 0
          %1483 = vmatpush1.bf16.msra.mxu0 0
          %1484 = vmatprep.subr.bf16.mxu0 0
          %1485 = vmatpush1.bf16.msra.mxu0 0
          %1486 = vmatprep.subr.bf16.mxu0 0
          %1487 = vmatpush1.bf16.msra.mxu0 0
          %1488 = vmatprep.subr.bf16.mxu0 0
          %1489 = vmatpush1.bf16.msra.mxu0 0
          %1490 = vmatprep.subr.bf16.mxu0 0
          %1491 = vmatpush1.bf16.msra.mxu0 0
          %1492 = vmatprep.subr.bf16.mxu0 0
          %1493 = vmatpush1.bf16.msra.mxu0 0
          %1494 = vmatprep.subr.bf16.mxu0 0
          %1495 = vmatpush1.bf16.msra.mxu0 0
          %1496 = vmatprep.subr.bf16.mxu0 0
          %1497 = vmatpush1.bf16.msra.mxu0 0
          %1498 = vmatprep.subr.bf16.mxu0 0
          %1499 = vmatpush1.bf16.msra.mxu0 0
          %1500 = vmatprep.subr.bf16.mxu0 0
          %1501 = vmatpush1.bf16.msra.mxu0 0
          %1502 = vmatprep.subr.bf16.mxu0 0
          %1503 = vmatpush1.bf16.msra.mxu0 0
          %1504 = vmatprep.subr.bf16.mxu0 0
          %1505 = vmatpush1.bf16.msra.mxu0 0
          %1506 = vmatprep.subr.bf16.mxu0 0
          %1507 = vmatpush1.bf16.msra.mxu0 0
          %1508 = vmatprep.subr.bf16.mxu0 0
          %1509 = vmatpush1.bf16.msra.mxu0 0
          %1510 = vmatprep.subr.bf16.mxu0 0
          %1511 = vmatpush1.bf16.msra.mxu0 0
          %1512 = vmatprep.mubr.bf16.mxu0 0
          %1513 = vmatmul.mubr.bf16.gmra.mrb[0].mxu0 %v1478
          %v1514 = vpop.f32.mrb[0].mxu0
          %v1515 = vadd.f32 0.0, %v1514
          %v1516 = vpop.f32.mrb[0].mxu0
          %v1517 = vpop.f32.mrb[0].mxu0
          %v1518 = vadd.f32 0.0, %v1517
          %v1519 = vpop.f32.mrb[0].mxu0
          %1520 = vdwg.mxu0
          %v1522 = vsel %vm1348, %v1431, 0
          %1524 = vmatprep.subr.bf16.mxu0 0
          %1525 = vmatpush1.bf16.msra.mxu0 %v1158
          %1526 = vmatprep.subr.bf16.mxu0 0
          %1527 = vmatpush1.bf16.msra.mxu0 0
          %1528 = vmatprep.subr.bf16.mxu0 0
          %1529 = vmatpush1.bf16.msra.mxu0 0
          %1530 = vmatprep.subr.bf16.mxu0 0
          %1531 = vmatpush1.bf16.msra.mxu0 0
          %1532 = vmatprep.subr.bf16.mxu0 0
          %1533 = vmatpush1.bf16.msra.mxu0 0
          %1534 = vmatprep.subr.bf16.mxu0 0
          %1535 = vmatpush1.bf16.msra.mxu0 0
          %1536 = vmatprep.subr.bf16.mxu0 0
          %1537 = vmatpush1.bf16.msra.mxu0 0
          %1538 = vmatprep.subr.bf16.mxu0 0
          %1539 = vmatpush1.bf16.msra.mxu0 0
          %1540 = vmatprep.subr.bf16.mxu0 0
          %1541 = vmatpush1.bf16.msra.mxu0 0
          %1542 = vmatprep.subr.bf16.mxu0 0
          %1543 = vmatpush1.bf16.msra.mxu0 0
          %1544 = vmatprep.subr.bf16.mxu0 0
          %1545 = vmatpush1.bf16.msra.mxu0 0
          %1546 = vmatprep.subr.bf16.mxu0 0
          %1547 = vmatpush1.bf16.msra.mxu0 0
          %1548 = vmatprep.subr.bf16.mxu0 0
          %1549 = vmatpush1.bf16.msra.mxu0 0
          %1550 = vmatprep.subr.bf16.mxu0 0
          %1551 = vmatpush1.bf16.msra.mxu0 0
          %1552 = vmatprep.subr.bf16.mxu0 0
          %1553 = vmatpush1.bf16.msra.mxu0 0
          %1554 = vmatprep.subr.bf16.mxu0 0
          %1555 = vmatpush1.bf16.msra.mxu0 0
          %1556 = vmatprep.mubr.bf16.mxu0 0
          %1557 = vmatmul.mubr.bf16.gmra.mrb[0].mxu0 %v1522
          %v1558 = vpop.f32.mrb[0].mxu0
          %v1559 = vadd.f32 0.0, %v1558
          %v1560 = vpop.f32.mrb[0].mxu0
          %v1561 = vpop.f32.mrb[0].mxu0
          %v1562 = vadd.f32 0.0, %v1561
          %v1563 = vpop.f32.mrb[0].mxu0
          %1564 = vdwg.mxu0
          %v1566 = vsel %vm1348, %v1432, 0
          %1568 = vmatprep.subr.bf16.mxu0 0
          %1569 = vmatpush1.bf16.msra.mxu0 %v1159
          %1570 = vmatprep.subr.bf16.mxu0 0
          %1571 = vmatpush1.bf16.msra.mxu0 0
          %1572 = vmatprep.subr.bf16.mxu0 0
          %1573 = vmatpush1.bf16.msra.mxu0 0
          %1574 = vmatprep.subr.bf16.mxu0 0
          %1575 = vmatpush1.bf16.msra.mxu0 0
          %1576 = vmatprep.subr.bf16.mxu0 0
          %1577 = vmatpush1.bf16.msra.mxu0 0
          %1578 = vmatprep.subr.bf16.mxu0 0
          %1579 = vmatpush1.bf16.msra.mxu0 0
          %1580 = vmatprep.subr.bf16.mxu0 0
          %1581 = vmatpush1.bf16.msra.mxu0 0
          %1582 = vmatprep.subr.bf16.mxu0 0
          %1583 = vmatpush1.bf16.msra.mxu0 0
          %1584 = vmatprep.subr.bf16.mxu0 0
          %1585 = vmatpush1.bf16.msra.mxu0 0
          %1586 = vmatprep.subr.bf16.mxu0 0
          %1587 = vmatpush1.bf16.msra.mxu0 0
          %1588 = vmatprep.subr.bf16.mxu0 0
          %1589 = vmatpush1.bf16.msra.mxu0 0
          %1590 = vmatprep.subr.bf16.mxu0 0
          %1591 = vmatpush1.bf16.msra.mxu0 0
          %1592 = vmatprep.subr.bf16.mxu0 0
          %1593 = vmatpush1.bf16.msra.mxu0 0
          %1594 = vmatprep.subr.bf16.mxu0 0
          %1595 = vmatpush1.bf16.msra.mxu0 0
          %1596 = vmatprep.subr.bf16.mxu0 0
          %1597 = vmatpush1.bf16.msra.mxu0 0
          %1598 = vmatprep.subr.bf16.mxu0 0
          %1599 = vmatpush1.bf16.msra.mxu0 0
          %1600 = vmatprep.mubr.bf16.mxu0 0
          %1601 = vmatmul.mubr.bf16.gmra.mrb[0].mxu0 %v1566
          %v1602 = vpop.f32.mrb[0].mxu0
          %v1603 = vadd.f32 0.0, %v1602
          %v1604 = vpop.f32.mrb[0].mxu0
          %v1605 = vpop.f32.mrb[0].mxu0
          %v1606 = vadd.f32 0.0, %v1605
          %v1607 = vpop.f32.mrb[0].mxu0
          %1608 = vdwg.mxu0
          %v1609 = vmul.f32 %v1471, %v1421
          %v1610 = vmul.f32 %v1474, %v1422
          %v1611 = vmul.f32 %v1515, %v1423
          %v1612 = vmul.f32 %v1518, %v1424
          %v1613 = vmul.f32 %v1559, %v1425
          %v1614 = vmul.f32 %v1562, %v1426
          %v1615 = vmul.f32 %v1603, %v1427
          %v1616 = vmul.f32 %v1606, %v1428
          %1617 = vxpose.xlu0.b32.start [1/16] %v1609, 128
          %1618 = vxpose.xlu0.b32.cont [2/16] %v1610, 128
          %1619 = vxpose.xlu0.b32.cont [3/16] 0.0, 128
          %1620 = vxpose.xlu0.b32.cont [4/16] 0.0, 128
          %1621 = vxpose.xlu0.b32.cont [5/16] 0.0, 128
          %1622 = vxpose.xlu0.b32.cont [6/16] 0.0, 128
          %1623 = vxpose.xlu0.b32.cont [7/16] 0.0, 128
          %1624 = vxpose.xlu0.b32.cont [8/16] 0.0, 128
          %1625 = vxpose.xlu0.b32.cont [9/16] 0.0, 128
          %1626 = vxpose.xlu0.b32.cont [10/16] 0.0, 128
          %1627 = vxpose.xlu0.b32.cont [11/16] 0.0, 128
          %1628 = vxpose.xlu0.b32.cont [12/16] 0.0, 128
          %1629 = vxpose.xlu0.b32.cont [13/16] 0.0, 128
          %1630 = vxpose.xlu0.b32.cont [14/16] 0.0, 128
          %1631 = vxpose.xlu0.b32.cont [15/16] 0.0, 128
          %1632 = vxpose.xlu0.b32.end [16/16] 0.0, 128
          %v1633 = vpop.trf.xlu0
          %v1634 = vpop.trf.xlu0
          %v1635 = vpop.trf.xlu0
          %v1636 = vpop.trf.xlu0
          %v1637 = vpop.trf.xlu0
          %v1638 = vpop.trf.xlu0
          %v1639 = vpop.trf.xlu0
          %v1640 = vpop.trf.xlu0
          %v1641 = vpop.trf.xlu0
          %v1642 = vpop.trf.xlu0
          %v1643 = vpop.trf.xlu0
          %v1644 = vpop.trf.xlu0
          %v1645 = vpop.trf.xlu0
          %v1646 = vpop.trf.xlu0
          %v1647 = vpop.trf.xlu0
          %v1648 = vpop.trf.xlu0
          %1649 = vxpose.xlu0.b32.start [1/16] %v1611, 128
          %1650 = vxpose.xlu0.b32.cont [2/16] %v1612, 128
          %1651 = vxpose.xlu0.b32.cont [3/16] 0.0, 128
          %1652 = vxpose.xlu0.b32.cont [4/16] 0.0, 128
          %1653 = vxpose.xlu0.b32.cont [5/16] 0.0, 128
          %1654 = vxpose.xlu0.b32.cont [6/16] 0.0, 128
          %1655 = vxpose.xlu0.b32.cont [7/16] 0.0, 128
          %1656 = vxpose.xlu0.b32.cont [8/16] 0.0, 128
          %1657 = vxpose.xlu0.b32.cont [9/16] 0.0, 128
          %1658 = vxpose.xlu0.b32.cont [10/16] 0.0, 128
          %1659 = vxpose.xlu0.b32.cont [11/16] 0.0, 128
          %1660 = vxpose.xlu0.b32.cont [12/16] 0.0, 128
          %1661 = vxpose.xlu0.b32.cont [13/16] 0.0, 128
          %1662 = vxpose.xlu0.b32.cont [14/16] 0.0, 128
          %1663 = vxpose.xlu0.b32.cont [15/16] 0.0, 128
          %1664 = vxpose.xlu0.b32.end [16/16] 0.0, 128
          %v1665 = vpop.trf.xlu0
          %v1666 = vpop.trf.xlu0
          %v1667 = vpop.trf.xlu0
          %v1668 = vpop.trf.xlu0
          %v1669 = vpop.trf.xlu0
          %v1670 = vpop.trf.xlu0
          %v1671 = vpop.trf.xlu0
          %v1672 = vpop.trf.xlu0
          %v1673 = vpop.trf.xlu0
          %v1674 = vpop.trf.xlu0
          %v1675 = vpop.trf.xlu0
          %v1676 = vpop.trf.xlu0
          %v1677 = vpop.trf.xlu0
          %v1678 = vpop.trf.xlu0
          %v1679 = vpop.trf.xlu0
          %v1680 = vpop.trf.xlu0
          %1681 = vxpose.xlu0.b32.start [1/16] %v1613, 128
          %1682 = vxpose.xlu0.b32.cont [2/16] %v1614, 128
          %1683 = vxpose.xlu0.b32.cont [3/16] 0.0, 128
          %1684 = vxpose.xlu0.b32.cont [4/16] 0.0, 128
          %1685 = vxpose.xlu0.b32.cont [5/16] 0.0, 128
          %1686 = vxpose.xlu0.b32.cont [6/16] 0.0, 128
          %1687 = vxpose.xlu0.b32.cont [7/16] 0.0, 128
          %1688 = vxpose.xlu0.b32.cont [8/16] 0.0, 128
          %1689 = vxpose.xlu0.b32.cont [9/16] 0.0, 128
          %1690 = vxpose.xlu0.b32.cont [10/16] 0.0, 128
          %1691 = vxpose.xlu0.b32.cont [11/16] 0.0, 128
          %1692 = vxpose.xlu0.b32.cont [12/16] 0.0, 128
          %1693 = vxpose.xlu0.b32.cont [13/16] 0.0, 128
          %1694 = vxpose.xlu0.b32.cont [14/16] 0.0, 128
          %1695 = vxpose.xlu0.b32.cont [15/16] 0.0, 128
          %1696 = vxpose.xlu0.b32.end [16/16] 0.0, 128
          %v1697 = vpop.trf.xlu0
          %v1698 = vpop.trf.xlu0
          %v1699 = vpop.trf.xlu0
          %v1700 = vpop.trf.xlu0
          %v1701 = vpop.trf.xlu0
          %v1702 = vpop.trf.xlu0
          %v1703 = vpop.trf.xlu0
          %v1704 = vpop.trf.xlu0
          %v1705 = vpop.trf.xlu0
          %v1706 = vpop.trf.xlu0
          %v1707 = vpop.trf.xlu0
          %v1708 = vpop.trf.xlu0
          %v1709 = vpop.trf.xlu0
          %v1710 = vpop.trf.xlu0
          %v1711 = vpop.trf.xlu0
          %v1712 = vpop.trf.xlu0
          %1713 = vxpose.xlu0.b32.start [1/16] %v1615, 128
          %1714 = vxpose.xlu0.b32.cont [2/16] %v1616, 128
          %1715 = vxpose.xlu0.b32.cont [3/16] 0.0, 128
          %1716 = vxpose.xlu0.b32.cont [4/16] 0.0, 128
          %1717 = vxpose.xlu0.b32.cont [5/16] 0.0, 128
          %1718 = vxpose.xlu0.b32.cont [6/16] 0.0, 128
          %1719 = vxpose.xlu0.b32.cont [7/16] 0.0, 128
          %1720 = vxpose.xlu0.b32.cont [8/16] 0.0, 128
          %1721 = vxpose.xlu0.b32.cont [9/16] 0.0, 128
          %1722 = vxpose.xlu0.b32.cont [10/16] 0.0, 128
          %1723 = vxpose.xlu0.b32.cont [11/16] 0.0, 128
          %1724 = vxpose.xlu0.b32.cont [12/16] 0.0, 128
          %1725 = vxpose.xlu0.b32.cont [13/16] 0.0, 128
          %1726 = vxpose.xlu0.b32.cont [14/16] 0.0, 128
          %1727 = vxpose.xlu0.b32.cont [15/16] 0.0, 128
          %1728 = vxpose.xlu0.b32.end [16/16] 0.0, 128
          %v1729 = vpop.trf.xlu0
          %v1730 = vpop.trf.xlu0
          %v1731 = vpop.trf.xlu0
          %v1732 = vpop.trf.xlu0
          %v1733 = vpop.trf.xlu0
          %v1734 = vpop.trf.xlu0
          %v1735 = vpop.trf.xlu0
          %v1736 = vpop.trf.xlu0
          %v1737 = vpop.trf.xlu0
          %v1738 = vpop.trf.xlu0
          %v1739 = vpop.trf.xlu0
          %v1740 = vpop.trf.xlu0
          %v1741 = vpop.trf.xlu0
          %v1742 = vpop.trf.xlu0
          %v1743 = vpop.trf.xlu0
          %v1744 = vpop.trf.xlu0
          %1745 = vxpose.xlu0.b32.start [1/16] %v1633, 128
          %1746 = vxpose.xlu0.b32.cont [2/16] %v1665, 128
          %1747 = vxpose.xlu0.b32.cont [3/16] %v1697, 128
          %1748 = vxpose.xlu0.b32.cont [4/16] %v1729, 128
          %1749 = vxpose.xlu0.b32.cont [5/16] 0.0, 128
          %1750 = vxpose.xlu0.b32.cont [6/16] 0.0, 128
          %1751 = vxpose.xlu0.b32.cont [7/16] 0.0, 128
          %1752 = vxpose.xlu0.b32.cont [8/16] 0.0, 128
          %1753 = vxpose.xlu0.b32.cont [9/16] 0.0, 128
          %1754 = vxpose.xlu0.b32.cont [10/16] 0.0, 128
          %1755 = vxpose.xlu0.b32.cont [11/16] 0.0, 128
          %1756 = vxpose.xlu0.b32.cont [12/16] 0.0, 128
          %1757 = vxpose.xlu0.b32.cont [13/16] 0.0, 128
          %1758 = vxpose.xlu0.b32.cont [14/16] 0.0, 128
          %1759 = vxpose.xlu0.b32.cont [15/16] 0.0, 128
          %1760 = vxpose.xlu0.b32.end [16/16] 0.0, 128
          %v1761 = vpop.trf.xlu0
          %v1762 = vpop.trf.xlu0
          %v1763 = vpop.trf.xlu0
          %v1764 = vpop.trf.xlu0
          %v1765 = vpop.trf.xlu0
          %v1766 = vpop.trf.xlu0
          %v1767 = vpop.trf.xlu0
          %v1768 = vpop.trf.xlu0
          %v1769 = vpop.trf.xlu0
          %v1770 = vpop.trf.xlu0
          %v1771 = vpop.trf.xlu0
          %v1772 = vpop.trf.xlu0
          %v1773 = vpop.trf.xlu0
          %v1774 = vpop.trf.xlu0
          %v1775 = vpop.trf.xlu0
          %v1776 = vpop.trf.xlu0
          %v1777 = vpack.c.bf16 %v1762, %v1761
          %s1778 = smul.addr %s781, 4
          %s1779 = scalar_lea.vmem %s9, %s1778
          %v1780 = vld [vmem:[%s1779] sm:$0xf]
          %v1781 = vld [vmem:[%s1779 + $0x4] sm:$0xf]
          %v1782 = vld [vmem:[%s1779 + $0x8] sm:$0xf]
          %v1783 = vld [vmem:[%s1779 + $0xc] sm:$0xf]
          %s1784 = scalar_lea.vmem %s10, %s726
          %v1785 = vld [vmem:[%s1784] sm:$0x1]
          %v1787 = vlaneseq
          %v1788 = vshrl.u32 %v1787, 7
          %v1789 = vsub.s32 0, %v1788
          %v1790 = vrot.slane %v1785, %v1789
          %v1796 = vunpack.c.l.b16 %v1780
          %v1797 = vunpack.c.l.b16 %v1781
          %v1798 = vunpack.c.l.b16 %v1782
          %v1799 = vunpack.c.l.b16 %v1783
          %v1800 = vpack.c.b16 %v1797, %v1796
          %v1801 = vpack.c.b16 %v1799, %v1798
          %v1805 = vsel %vm720, %v1777, 0
          %1807 = vmatprep.subr.bf16.mxu0 0
          %1808 = vmatpush1.bf16.msra.mxu0 %v1800
          %1809 = vmatprep.subr.bf16.mxu0 0
          %1810 = vmatpush1.bf16.msra.mxu0 %v1801
          %1811 = vmatprep.subr.bf16.mxu0 0
          %1812 = vmatpush1.bf16.msra.mxu0 0
          %1813 = vmatprep.subr.bf16.mxu0 0
          %1814 = vmatpush1.bf16.msra.mxu0 0
          %1815 = vmatprep.subr.bf16.mxu0 0
          %1816 = vmatpush1.bf16.msra.mxu0 0
          %1817 = vmatprep.subr.bf16.mxu0 0
          %1818 = vmatpush1.bf16.msra.mxu0 0
          %1819 = vmatprep.subr.bf16.mxu0 0
          %1820 = vmatpush1.bf16.msra.mxu0 0
          %1821 = vmatprep.subr.bf16.mxu0 0
          %1822 = vmatpush1.bf16.msra.mxu0 0
          %1823 = vmatprep.subr.bf16.mxu0 0
          %1824 = vmatpush1.bf16.msra.mxu0 0
          %1825 = vmatprep.subr.bf16.mxu0 0
          %1826 = vmatpush1.bf16.msra.mxu0 0
          %1827 = vmatprep.subr.bf16.mxu0 0
          %1828 = vmatpush1.bf16.msra.mxu0 0
          %1829 = vmatprep.subr.bf16.mxu0 0
          %1830 = vmatpush1.bf16.msra.mxu0 0
          %1831 = vmatprep.subr.bf16.mxu0 0
          %1832 = vmatpush1.bf16.msra.mxu0 0
          %1833 = vmatprep.subr.bf16.mxu0 0
          %1834 = vmatpush1.bf16.msra.mxu0 0
          %1835 = vmatprep.subr.bf16.mxu0 0
          %1836 = vmatpush1.bf16.msra.mxu0 0
          %1837 = vmatprep.subr.bf16.mxu0 0
          %1838 = vmatpush1.bf16.msra.mxu0 0
          %1839 = vmatprep.mubr.bf16.mxu0 0
          %1840 = vmatmul.mubr.bf16.gmra.mrb[0].mxu0 %v1805
          %v1841 = vpop.f32.mrb[0].mxu0
          %v1842 = vadd.f32 %v1790, %v1841
          %v1843 = vpop.f32.mrb[0].mxu0
          %v1844 = vpop.f32.mrb[0].mxu0
          %v1845 = vadd.f32 %v1790, %v1844
          %v1846 = vpop.f32.mrb[0].mxu0
          %1847 = vdwg.mxu0
          %v1848 = vadd.f32 %v731, %v1842
          %v1849 = vadd.f32 %v732, %v1845
          %s1850 = scalar_lea.vmem %s11, %s726
          %v1851 = vld [vmem:[%s1850] sm:$0x1]
          %s1852 = scalar_lea.vmem %s12, %s726
          %v1853 = vld [vmem:[%s1852] sm:$0x1]
          %v1854 = vsel %vm720, %v1848, 0.0
          %1855 = vadd.xlane.f32.xlu0 %v1854
          %v1856 = vpop.xlane.xlu0 %1855
          %v1857 = vsel %vm720, %v1849, 0.0
          %1858 = vadd.xlane.f32.xlu0 %v1857
          %v1859 = vpop.xlane.xlu0 %1858
          %v1860 = vmul.f32 %v1856, %v743
          %v1861 = vmul.f32 %v1859, %v743
          %v1862 = vsub.f32 %v1848, %v1860
          %v1863 = vsub.f32 %v1849, %v1861
          %v1864 = vmul.f32 %v1862, %v1862
          %v1865 = vmul.f32 %v1863, %v1863
          %v1866 = vsel %vm720, %v1864, 0.0
          %1867 = vadd.xlane.f32.xlu0 %v1866
          %v1868 = vpop.xlane.xlu0 %1867
          %v1869 = vsel %vm720, %v1865, 0.0
          %1870 = vadd.xlane.f32.xlu0 %v1869
          %v1871 = vpop.xlane.xlu0 %1870
          %v1872 = vmul.f32 %v1868, %v743
          %v1873 = vmul.f32 %v1871, %v743
          %v1874 = vadd.f32 %v1872, 1e-05
          %v1875 = vadd.f32 %v1873, 1e-05
          %v1876 = vrsqrt.pop %v1874
          %v1877 = vrsqrt.pop %v1875
          %v1878 = vmul.f32 %v1862, %v1876
          %v1879 = vmul.f32 %v1863, %v1877
          %v1881 = vlaneseq
          %v1882 = vshrl.u32 %v1881, 7
          %v1883 = vsub.s32 0, %v1882
          %v1884 = vrot.slane %v1851, %v1883
          %v1886 = vmul.f32 %v1878, %v1884
          %v1887 = vmul.f32 %v1879, %v1884
          %v1889 = vlaneseq
          %v1890 = vshrl.u32 %v1889, 7
          %v1891 = vsub.s32 0, %v1890
          %v1892 = vrot.slane %v1853, %v1891
          %v1894 = vadd.f32 %v1886, %v1892
          %v1895 = vadd.f32 %v1887, %v1892
          %v1896 = vpack.c.bf16 %v1895, %v1894
          %s1897 = smul.addr %s781, 4
          %s1898 = scalar_lea.vmem %s13, %s1897
          %v1899 = vld [vmem:[%s1898] sm:$0xf]
          %v1900 = vld [vmem:[%s1898 + $0x4] sm:$0xf]
          %v1901 = vld [vmem:[%s1898 + $0x8] sm:$0xf]
          %v1902 = vld [vmem:[%s1898 + $0xc] sm:$0xf]
          %s1903 = scalar_lea.vmem %s14, %s726
          %v1904 = vld [vmem:[%s1903] sm:$0x1]
          %v1906 = vlaneseq
          %v1907 = vshrl.u32 %v1906, 7
          %v1908 = vsub.s32 0, %v1907
          %v1909 = vrot.slane %v1904, %v1908
          %v1915 = vunpack.c.l.b16 %v1899
          %v1916 = vunpack.c.l.b16 %v1900
          %v1917 = vunpack.c.l.b16 %v1901
          %v1918 = vunpack.c.l.b16 %v1902
          %v1919 = vpack.c.b16 %v1916, %v1915
          %v1920 = vpack.c.b16 %v1918, %v1917
          %v1924 = vsel %vm720, %v1896, 0
          %1926 = vmatprep.subr.bf16.mxu0 0
          %1927 = vmatpush1.bf16.msra.mxu0 %v1919
          %1928 = vmatprep.subr.bf16.mxu0 0
          %1929 = vmatpush1.bf16.msra.mxu0 %v1920
          %1930 = vmatprep.subr.bf16.mxu0 0
          %1931 = vmatpush1.bf16.msra.mxu0 0
          %1932 = vmatprep.subr.bf16.mxu0 0
          %1933 = vmatpush1.bf16.msra.mxu0 0
          %1934 = vmatprep.subr.bf16.mxu0 0
          %1935 = vmatpush1.bf16.msra.mxu0 0
          %1936 = vmatprep.subr.bf16.mxu0 0
          %1937 = vmatpush1.bf16.msra.mxu0 0
          %1938 = vmatprep.subr.bf16.mxu0 0
          %1939 = vmatpush1.bf16.msra.mxu0 0
          %1940 = vmatprep.subr.bf16.mxu0 0
          %1941 = vmatpush1.bf16.msra.mxu0 0
          %1942 = vmatprep.subr.bf16.mxu0 0
          %1943 = vmatpush1.bf16.msra.mxu0 0
          %1944 = vmatprep.subr.bf16.mxu0 0
          %1945 = vmatpush1.bf16.msra.mxu0 0
          %1946 = vmatprep.subr.bf16.mxu0 0
          %1947 = vmatpush1.bf16.msra.mxu0 0
          %1948 = vmatprep.subr.bf16.mxu0 0
          %1949 = vmatpush1.bf16.msra.mxu0 0
          %1950 = vmatprep.subr.bf16.mxu0 0
          %1951 = vmatpush1.bf16.msra.mxu0 0
          %1952 = vmatprep.subr.bf16.mxu0 0
          %1953 = vmatpush1.bf16.msra.mxu0 0
          %1954 = vmatprep.subr.bf16.mxu0 0
          %1955 = vmatpush1.bf16.msra.mxu0 0
          %1956 = vmatprep.subr.bf16.mxu0 0
          %1957 = vmatpush1.bf16.msra.mxu0 0
          %1958 = vmatprep.mubr.bf16.mxu0 0
          %1959 = vmatmul.mubr.bf16.gmra.mrb[0].mxu0 %v1924
          %v1960 = vpop.f32.mrb[0].mxu0
          %v1961 = vadd.f32 %v1909, %v1960
          %v1962 = vpop.f32.mrb[0].mxu0
          %v1963 = vpop.f32.mrb[0].mxu0
          %v1964 = vadd.f32 %v1909, %v1963
          %v1965 = vpop.f32.mrb[0].mxu0
          %1966 = vdwg.mxu0
          %v1967 = vmul.f32 %v1961, %v1961
          %v1968 = vmul.f32 %v1964, %v1964
          %v1969 = vmul.f32 %v1961, %v1967
          %v1970 = vmul.f32 %v1964, %v1968
          %v1971 = vmul.f32 %v1969, 0.044715
          %v1972 = vmul.f32 %v1970, 0.044715
          %v1973 = vadd.f32 %v1961, %v1971
          %v1974 = vadd.f32 %v1964, %v1972
          %v1975 = vmul.f32 %v1973, 0.7978846
          %v1976 = vmul.f32 %v1974, 0.7978846
          %v1977 = vtanh.pop %v1975
          %v1978 = vtanh.pop %v1976
          %v1979 = vadd.f32 %v1977, 1.0
          %v1980 = vadd.f32 %v1978, 1.0
          %v1981 = vmul.f32 %v1979, 0.5
          %v1982 = vmul.f32 %v1980, 0.5
          %v1983 = vmul.f32 %v1961, %v1981
          %v1984 = vmul.f32 %v1964, %v1982
          %v1985 = vpack.c.bf16 %v1984, %v1983
          %s1986 = smul.u32 %s726, 16
          %s1987 = smul.addr %s1986, 4
          %s1988 = scalar_lea.vmem %s15, %s1987
          %v1989 = vld [vmem:[%s1988] sm:$0xf]
          %v1990 = vld [vmem:[%s1988 + $0x4] sm:$0xf]
          %v1991 = vld [vmem:[%s1988 + $0x8] sm:$0xf]
          %v1992 = vld [vmem:[%s1988 + $0xc] sm:$0xf]
          %v1993 = vld [vmem:[%s1988 + $0x10] sm:$0xf]
          %v1994 = vld [vmem:[%s1988 + $0x14] sm:$0xf]
          %v1995 = vld [vmem:[%s1988 + $0x18] sm:$0xf]
          %v1996 = vld [vmem:[%s1988 + $0x1c] sm:$0xf]
          %v1997 = vld [vmem:[%s1988 + $0x20] sm:$0xf]
          %v1998 = vld [vmem:[%s1988 + $0x24] sm:$0xf]
          %v1999 = vld [vmem:[%s1988 + $0x28] sm:$0xf]
          %v2000 = vld [vmem:[%s1988 + $0x2c] sm:$0xf]
          %v2001 = vld [vmem:[%s1988 + $0x30] sm:$0xf]
          %v2002 = vld [vmem:[%s1988 + $0x34] sm:$0xf]
          %v2003 = vld [vmem:[%s1988 + $0x38] sm:$0xf]
          %v2004 = vld [vmem:[%s1988 + $0x3c] sm:$0xf]
          %s2005 = scalar_lea.vmem %s16, %s726
          %v2006 = vld [vmem:[%s2005] sm:$0x1]
          %v2008 = vlaneseq
          %v2009 = vshrl.u32 %v2008, 7
          %v2010 = vsub.s32 0, %v2009
          %v2011 = vrot.slane %v2006, %v2010
          %v2029 = vunpack.c.l.b16 %v1989
          %v2030 = vunpack.c.l.b16 %v1990
          %v2031 = vunpack.c.l.b16 %v1991
          %v2032 = vunpack.c.l.b16 %v1992
          %v2033 = vunpack.c.l.b16 %v1993
          %v2034 = vunpack.c.l.b16 %v1994
          %v2035 = vunpack.c.l.b16 %v1995
          %v2036 = vunpack.c.l.b16 %v1996
          %v2037 = vunpack.c.l.b16 %v1997
          %v2038 = vunpack.c.l.b16 %v1998
          %v2039 = vunpack.c.l.b16 %v1999
          %v2040 = vunpack.c.l.b16 %v2000
          %v2041 = vunpack.c.l.b16 %v2001
          %v2042 = vunpack.c.l.b16 %v2002
          %v2043 = vunpack.c.l.b16 %v2003
          %v2044 = vunpack.c.l.b16 %v2004
          %v2045 = vpack.c.b16 %v2030, %v2029
          %v2046 = vpack.c.b16 %v2032, %v2031
          %v2047 = vpack.c.b16 %v2034, %v2033
          %v2048 = vpack.c.b16 %v2036, %v2035
          %v2049 = vpack.c.b16 %v2038, %v2037
          %v2050 = vpack.c.b16 %v2040, %v2039
          %v2051 = vpack.c.b16 %v2042, %v2041
          %v2052 = vpack.c.b16 %v2044, %v2043
          %2061 = vmatprep.subr.bf16.mxu0 0
          %2062 = vmatpush1.bf16.msra.mxu0 %v2045
          %2063 = vmatprep.subr.bf16.mxu0 0
          %2064 = vmatpush1.bf16.msra.mxu0 %v2046
          %2065 = vmatprep.subr.bf16.mxu0 0
          %2066 = vmatpush1.bf16.msra.mxu0 %v2047
          %2067 = vmatprep.subr.bf16.mxu0 0
          %2068 = vmatpush1.bf16.msra.mxu0 %v2048
          %2069 = vmatprep.subr.bf16.mxu0 0
          %2070 = vmatpush1.bf16.msra.mxu0 %v2049
          %2071 = vmatprep.subr.bf16.mxu0 0
          %2072 = vmatpush1.bf16.msra.mxu0 %v2050
          %2073 = vmatprep.subr.bf16.mxu0 0
          %2074 = vmatpush1.bf16.msra.mxu0 %v2051
          %2075 = vmatprep.subr.bf16.mxu0 0
          %2076 = vmatpush1.bf16.msra.mxu0 %v2052
          %2077 = vmatprep.subr.bf16.mxu0 0
          %2078 = vmatpush1.bf16.msra.mxu0 0
          %2079 = vmatprep.subr.bf16.mxu0 0
          %2080 = vmatpush1.bf16.msra.mxu0 0
          %2081 = vmatprep.subr.bf16.mxu0 0
          %2082 = vmatpush1.bf16.msra.mxu0 0
          %2083 = vmatprep.subr.bf16.mxu0 0
          %2084 = vmatpush1.bf16.msra.mxu0 0
          %2085 = vmatprep.subr.bf16.mxu0 0
          %2086 = vmatpush1.bf16.msra.mxu0 0
          %2087 = vmatprep.subr.bf16.mxu0 0
          %2088 = vmatpush1.bf16.msra.mxu0 0
          %2089 = vmatprep.subr.bf16.mxu0 0
          %2090 = vmatpush1.bf16.msra.mxu0 0
          %2091 = vmatprep.subr.bf16.mxu0 0
          %2092 = vmatpush1.bf16.msra.mxu0 0
          %2093 = vmatprep.mubr.bf16.mxu0 0
          %2094 = vmatmul.mubr.bf16.gmra.mrb[0].mxu0 %v1985
          %v2095 = vpop.f32.mrb[0].mxu0
          %v2096 = vadd.f32 %v2011, %v2095
          %v2097 = vpop.f32.mrb[0].mxu0
          %v2098 = vpop.f32.mrb[0].mxu0
          %v2099 = vadd.f32 %v2011, %v2098
          %v2100 = vpop.f32.mrb[0].mxu0
          %2101 = vdwg.mxu0
          %v2102 = vadd.f32 %v1848, %v2096
          %v2103 = vadd.f32 %v1849, %v2099
          %2104 = vst.msk [vmem:[#allocation2] sm:$0xff] %vm720, %v2102
          %2105 = vst.msk [vmem:[#allocation2 + $0x8] sm:$0xff] %vm720, %v2103
        $region109: #{tpu_custom_call.1} parent=103 // loop_footer
          %s730 = sadd.s32 1, %s726
        $region110: #{tpu_custom_call.1} parent=103 // loop_footer_branch
          %725 = sbr.rel target = $region106
        $region111: #{tpu_custom_call.1} parent=103 // loop_exit
          _
        %v2106 = vld [vmem:[#allocation2] sm:$0xff]
        %v2107 = vld [vmem:[#allocation2 + $0x8] sm:$0xff]
        %v2108 = vld [vmem:[%s17] sm:$0x1]
        %v2109 = vld [vmem:[%s18] sm:$0x1]
        %v2110 = vsel %vm720, %v2106, 0.0
        %2111 = vadd.xlane.f32.xlu0 %v2110
        %v2112 = vpop.xlane.xlu0 %2111
        %v2113 = vsel %vm720, %v2107, 0.0
        %2114 = vadd.xlane.f32.xlu0 %v2113
        %v2115 = vpop.xlane.xlu0 %2114
        %v2116 = vrcp.pop 32.0
        %v2117 = vmul.f32 %v2112, %v2116
        %v2118 = vmul.f32 %v2115, %v2116
        %v2119 = vsub.f32 %v2106, %v2117
        %v2120 = vsub.f32 %v2107, %v2118
        %v2121 = vmul.f32 %v2119, %v2119
        %v2122 = vmul.f32 %v2120, %v2120
        %v2123 = vsel %vm720, %v2121, 0.0
        %2124 = vadd.xlane.f32.xlu0 %v2123
        %v2125 = vpop.xlane.xlu0 %2124
        %v2126 = vsel %vm720, %v2122, 0.0
        %2127 = vadd.xlane.f32.xlu0 %v2126
        %v2128 = vpop.xlane.xlu0 %2127
        %v2129 = vmul.f32 %v2125, %v2116
        %v2130 = vmul.f32 %v2128, %v2116
        %v2131 = vadd.f32 %v2129, 1e-05
        %v2132 = vadd.f32 %v2130, 1e-05
        %v2133 = vrsqrt.pop %v2131
        %v2134 = vrsqrt.pop %v2132
        %v2135 = vmul.f32 %v2119, %v2133
        %v2136 = vmul.f32 %v2120, %v2134
        %v2138 = vlaneseq
        %v2139 = vshrl.u32 %v2138, 7
        %v2140 = vsub.s32 0, %v2139
        %v2141 = vrot.slane %v2108, %v2140
        %v2143 = vmul.f32 %v2135, %v2141
        %v2144 = vmul.f32 %v2136, %v2141
        %v2146 = vlaneseq
        %v2147 = vshrl.u32 %v2146, 7
        %v2148 = vsub.s32 0, %v2147
        %v2149 = vrot.slane %v2109, %v2148
        %v2151 = vadd.f32 %v2143, %v2149
        %v2152 = vadd.f32 %v2144, %v2149
        %v2153 = vpack.c.bf16 %v2152, %v2151
        %v2154 = vld [vmem:[%s19] sm:$0xf]
        %v2155 = vld [vmem:[%s19 + $0x4] sm:$0xf]
        %v2156 = vld [vmem:[%s19 + $0x8] sm:$0xf]
        %v2157 = vld [vmem:[%s19 + $0xc] sm:$0xf]
        %v2158 = vld [vmem:[%s20] sm:$0x1]
        %v2160 = vlaneseq
        %v2161 = vshrl.u32 %v2160, 7
        %v2162 = vsub.s32 0, %v2161
        %v2163 = vrot.slane %v2158, %v2162
        %v2169 = vunpack.c.l.b16 %v2154
        %v2170 = vunpack.c.l.b16 %v2155
        %v2171 = vunpack.c.l.b16 %v2156
        %v2172 = vunpack.c.l.b16 %v2157
        %v2173 = vpack.c.b16 %v2170, %v2169
        %v2174 = vpack.c.b16 %v2172, %v2171
        %v2178 = vsel %vm720, %v2153, 0
        %2180 = vmatprep.subr.bf16.mxu0 0
        %2181 = vmatpush1.bf16.msra.mxu0 %v2173
        %2182 = vmatprep.subr.bf16.mxu0 0
        %2183 = vmatpush1.bf16.msra.mxu0 %v2174
        %2184 = vmatprep.subr.bf16.mxu0 0
        %2185 = vmatpush1.bf16.msra.mxu0 0
        %2186 = vmatprep.subr.bf16.mxu0 0
        %2187 = vmatpush1.bf16.msra.mxu0 0
        %2188 = vmatprep.subr.bf16.mxu0 0
        %2189 = vmatpush1.bf16.msra.mxu0 0
        %2190 = vmatprep.subr.bf16.mxu0 0
        %2191 = vmatpush1.bf16.msra.mxu0 0
        %2192 = vmatprep.subr.bf16.mxu0 0
        %2193 = vmatpush1.bf16.msra.mxu0 0
        %2194 = vmatprep.subr.bf16.mxu0 0
        %2195 = vmatpush1.bf16.msra.mxu0 0
        %2196 = vmatprep.subr.bf16.mxu0 0
        %2197 = vmatpush1.bf16.msra.mxu0 0
        %2198 = vmatprep.subr.bf16.mxu0 0
        %2199 = vmatpush1.bf16.msra.mxu0 0
        %2200 = vmatprep.subr.bf16.mxu0 0
        %2201 = vmatpush1.bf16.msra.mxu0 0
        %2202 = vmatprep.subr.bf16.mxu0 0
        %2203 = vmatpush1.bf16.msra.mxu0 0
        %2204 = vmatprep.subr.bf16.mxu0 0
        %2205 = vmatpush1.bf16.msra.mxu0 0
        %2206 = vmatprep.subr.bf16.mxu0 0
        %2207 = vmatpush1.bf16.msra.mxu0 0
        %2208 = vmatprep.subr.bf16.mxu0 0
        %2209 = vmatpush1.bf16.msra.mxu0 0
        %2210 = vmatprep.subr.bf16.mxu0 0
        %2211 = vmatpush1.bf16.msra.mxu0 0
        %2212 = vmatprep.mubr.bf16.mxu0 0
        %2213 = vmatmul.mubr.bf16.gmra.mrb[0].mxu0 %v2178
        %v2214 = vpop.f32.mrb[0].mxu0
        %v2215 = vadd.f32 %v2163, %v2214
        %v2216 = vpop.f32.mrb[0].mxu0
        %v2217 = vpop.f32.mrb[0].mxu0
        %v2218 = vadd.f32 %v2163, %v2217
        %v2219 = vpop.f32.mrb[0].mxu0
        %2220 = vdwg.mxu0
        %2221 = vst [vmem:[%s649] sm:$0xff] %v2215
        %2222 = vst [vmem:[%s649 + $0x8] sm:$0xff] %v2218
        %s2223 = sand.u32 %s489, 1
        %s2224 = scalar_lea.sflag [#allocation4], %s2223
        %s2225 = sand.u32 %s489, 1
        %s2226 = smul.addr %s2225, 16
        %s2227 = scalar_lea.vmem [#allocation3], %s2226
        // Predicated region
        $region112: #{tpu_custom_call.1} parent=103 // pred_check
          %p2228 = pneg %p499
        $region113: #{tpu_custom_call.1} parent=103 // pred_check_branch
          %2230 = sbr.rel (%p2228) target = $region115
        $region114: #{tpu_custom_call.1} parent=103 // pred_region
          %s2232 = ssub.s32 256, 256
          %2233 = vsyncadd %s2224, %s2232
          %s2234 = smul.addr %s35, 2
          %s2235 = smul.addr %s2234, 128
          %s2236 = scalar_lea.hbm %s21, %s2235
          %s2237 = sshll.u32 %s2227, 4
          %s2238 = int_to_ptr.vmem [resolvable:$true] %s2237
          %2243 = dma.vmem_to_hbm [thread:$0]  %s2238, 256, %s2236, %s2224, 128, 128, 8
        $region115: #{tpu_custom_call.1} parent=103 // pred_fallthru
          _
      $region104: #{tpu_custom_call.1} parent=5 // pred_fallthru
        _
      %p2244 = scmp.le.s32.totalorder 2, %s30
      // Predicated region
      $region116: #{tpu_custom_call.1} parent=5 // pred_check
        %p2245 = pneg %p2244
      $region117: #{tpu_custom_call.1} parent=5 // pred_check_branch
        %2247 = sbr.rel (%p2245) target = $region119
      $region118: #{tpu_custom_call.1} parent=5 // pred_region
        %s2248 = ssub.s32 %s30, 2
        // Predicated region
        $region120: #{tpu_custom_call.1} parent=118 // pred_check
          %p2249 = pneg %p505
        $region121: #{tpu_custom_call.1} parent=118 // pred_check_branch
          %2251 = sbr.rel (%p2249) target = $region123
        $region122: #{tpu_custom_call.1} parent=118 // pred_region
          %s2252 = sand.u32 %s490, 1
          %s2253 = scalar_lea.sflag [#allocation4], %s2252
          %s2254 = sand.u32 %s490, 1
          %s2255 = smul.addr %s2254, 16
          %s2256 = scalar_lea.vmem [#allocation3], %s2255
          %2257 = dma.done %s2253, 256
        $region123: #{tpu_custom_call.1} parent=118 // pred_fallthru
          _
      $region119: #{tpu_custom_call.1} parent=5 // pred_fallthru
        _
    $region6: #{tpu_custom_call.1} parent=1 // loop_footer
      %s34 = sadd.s32 1, %s30
    $region7: #{tpu_custom_call.1} parent=1 // loop_footer_branch
      %29 = sbr.rel target = $region3
    $region8: #{tpu_custom_call.1} parent=1 // loop_exit
      _
    %2258 = vsyncpa [#allocation4], 1
    %s2259 = scalar_lea.sflag [#allocation4], 1
    %2260 = vsyncpa %s2259, 1

</llo_original>
